<compile_context>
chip_gen: v6e
topology: v6e:2x2x1
jax: 0.10.0
libtpu: 0.0.40
codegen_flags: <defaults>
</compile_context>

<pallas_src>
import functools
import math

import jax
import jax.numpy as jnp
import numpy as np
from jax import lax
from jax.experimental import pallas as pl
from jax.experimental.pallas import tpu as pltpu


def _soft_length_kernel(x_ref, p_ref, sum_ref, excl_ref, out_ref, *,
                        n_rep, two_over_log_t):
    f32 = jnp.float32
    x = x_ref[...].astype(f32)                    # [Bb, T*O], lane-dense
    sum_mat = sum_ref[...]                        # per-step sum & broadcast
    excl_mat = excl_ref[...]                      # strictly-earlier-step mean

    def gdot(a, w):                               # segmented reduce on the MXU
        return jnp.dot(a, w, preferred_element_type=f32,
                       precision=lax.Precision.HIGHEST)

    def recip(v):                                 # EUP approx + 1 Newton step
        r = pl.reciprocal(v, approx=True)
        return r * (2.0 - v * r)

    # ---- shared softmax statistics: one exp pass feeds entropy AND probs ---
    # Row max (over all steps) >= each per-step max, so exp(x - c) <= 1.
    # NOTE: assumes the per-batch logit spread is < ~88 so no per-step
    # underflow; the reference uses the per-step max.
    c = jnp.max(x, axis=-1, keepdims=True)        # [Bb, 1]
    e = jnp.exp(x - c)                            # [Bb, T*O]
    sum_e = gdot(e, sum_mat)                      # per-step sums, lane-bcast
    inv_sum = recip(sum_e)
    probs = e * inv_sum                           # softmax over outputs
    lse = c + jnp.log(sum_e)                      # per-step logsumexp, bcast

    # ---- entropy -> norm (normalizer log(num_steps), copied from PyTorch) --
    ent = gdot(probs * (lse - x), sum_mat)        # per-step entropy, bcast
    norm = ent * two_over_log_t - 1.0

    # ---- tiny MLP on the VPU: hidden units tiled over the O lanes of each
    # step, n_rep = ceil(width / O) replicas; per-step lane sum via the MXU ---
    partial = None
    for r in range(n_rep):
        w1r = p_ref[r:r + 1, :]
        b1r = p_ref[n_rep + r:n_rep + r + 1, :]
        w2r = p_ref[2 * n_rep + r:2 * n_rep + r + 1, :]   # holds 2*w2, 0-padded
        h = jnp.maximum(norm * w1r + b1r, 0.0)
        contrib = h * w2r
        partial = contrib if partial is None else partial + contrib
    bias_row = p_ref[3 * n_rep:3 * n_rep + 1, :]          # b2 - log(ns_t)
    last_row = p_ref[3 * n_rep + 1:3 * n_rep + 2, :]      # 1.0 on last step
    z = gdot(partial, sum_mat) + bias_row                 # linear_2 - log(ns)

    # ---- flags / residuals, vectorized over the whole block ----------------
    #   flags      = sigmoid(z)
    #   residual_t = prod_{u<t}(1 - flags_u) = exp(-sum_{u<t} softplus(z_u))
    a = jnp.exp(-jnp.abs(z))                      # shared by sigmoid/softplus
    inv1a = recip(1.0 + a)
    flags = jnp.where(z >= 0.0, inv1a, a * inv1a)
    flag_next = flags + last_row * (1.0 - flags)  # == flags[:, 1:] (last -> 1)
    softplus = jnp.maximum(z, 0.0) + jnp.log(1.0 + a)
    cum = gdot(softplus, excl_mat)                # exclusive prefix over steps
    residual = jnp.exp(-cum)

    out_ref[...] = (probs * (flag_next * residual)).astype(out_ref.dtype)


def soft_length(logits, w1, b1, w2, b2, *, block_b=512):
    """logits: [B, T, O]; w1: [width, 1]; b1: [width]; w2: [1, width]; b2: [1]."""
    B, T, O = logits.shape
    TO = T * O
    width = int(b1.shape[0])
    n_rep = -(-width // O)                         # ceil(width / O)
    f32 = jnp.float32

    # ---- lane constants for the tiny MLP / flags, one [P, T*O] array -------
    def _pad(v, n):
        v = jnp.asarray(v, f32).reshape(-1)
        if v.shape[0] < n:
            v = jnp.concatenate([v, jnp.zeros((n - v.shape[0],), f32)])
        return v

    w1_p = _pad(w1, n_rep * O)                     # Linear(1,width).weight[:,0]
    b1_p = _pad(b1, n_rep * O)
    w2_p = _pad(2.0 * jnp.asarray(w2, f32), n_rep * O)   # fold the "*2" in
    rows = []
    for src in (w1_p, b1_p, w2_p):
        for r in range(n_rep):
            rows.append(jnp.tile(src[r * O:(r + 1) * O], T))
    # bias row: b2 - log(ns_t); ns_t = T-1-t for t < T-1 (the last step's flag
    # is unused / overridden, give it ns=1 so the constant stays finite).
    ns = np.array([float(T - 1 - t) if t < T - 1 else 1.0 for t in range(T)],
                  np.float32)
    log_ns = np.repeat(np.log(ns), O)              # [T*O]
    rows.append(jnp.asarray(b2, f32).reshape(()) - jnp.asarray(log_ns))
    # mask row: 1.0 on the lanes of the last step, else 0.0.
    rows.append(jnp.asarray(
        np.repeat((np.arange(T) == T - 1).astype(np.float32), O)))
    params = jnp.stack(rows, axis=0)               # [3*n_rep + 2, T*O]
    P = params.shape[0]

    # ---- constant matrices for per-step (segmented) reductions on the MXU --
    g = np.arange(TO) // O
    sum_mat = jnp.asarray((g[:, None] == g[None, :]).astype(np.float32))
    excl_mat = jnp.asarray((g[:, None] < g[None, :]).astype(np.float32) / O)

    # ---- lane-dense [B, T*O] view; pad batch to a sublane multiple ---------
    x2 = logits.reshape(B, TO)
    b_pad = -(-B // 8) * 8
    if b_pad != B:
        x2 = jnp.pad(x2, ((0, b_pad - B), (0, 0)))
    bb = min(block_b, b_pad)
    grid = (pl.cdiv(b_pad, bb),)

    cost = pl.CostEstimate(
        flops=int(b_pad) * TO * (40 + 8 * TO),
        transcendentals=int(b_pad) * TO * 6,
        bytes_accessed=2 * int(b_pad) * TO * 4,
    )

    out2 = pl.pallas_call(
        functools.partial(_soft_length_kernel, n_rep=n_rep,
                          two_over_log_t=2.0 / math.log(float(T))),
        out_shape=jax.ShapeDtypeStruct((b_pad, TO), logits.dtype),
        grid_spec=pltpu.PrefetchScalarGridSpec(
            num_scalar_prefetch=0,
            grid=grid,
            in_specs=[
                pl.BlockSpec((bb, TO), lambda i: (i, 0)),
                pl.BlockSpec((P, TO), lambda i: (0, 0)),
                pl.BlockSpec((TO, TO), lambda i: (0, 0)),
                pl.BlockSpec((TO, TO), lambda i: (0, 0)),
            ],
            out_specs=pl.BlockSpec((bb, TO), lambda i: (i, 0)),
        ),
        compiler_params=pltpu.CompilerParams(
            dimension_semantics=("parallel",)),
        cost_estimate=cost,
    )(x2, params, sum_mat, excl_mat)

    return out2[:B].reshape(B, T, O)


def soft_length_ref(logits, w1, b1, w2, b2):
    """Pure-JAX reference mirroring the PyTorch forward."""
    B, T, O = logits.shape
    x_trim = logits[:, :-1, :].reshape(-1, O)
    lse = jax.scipy.special.logsumexp(x_trim, axis=1, keepdims=True)
    p = jax.nn.softmax(x_trim, axis=1)
    entropy = jnp.sum(-p * (x_trim - lse), axis=1, keepdims=True)
    norm = 2.0 * entropy / jnp.log(jnp.float32(T)) - 1.0
    h = jnp.maximum(jnp.dot(norm, w1.T, precision="highest") + b1, 0.0)
    lin2 = jnp.dot(2.0 * h, w2.T, precision="highest") + b2
    lin2 = lin2.reshape(B, T - 1, 1)
    ns = jnp.arange(T - 1, 0, -1, dtype=logits.dtype).reshape(1, T - 1, 1)
    flags_trim = jax.nn.sigmoid(lin2 - jnp.log(ns))
    zeros = jnp.zeros((B, 1, 1), logits.dtype)
    ones = jnp.ones((B, 1, 1), logits.dtype)
    flags = jnp.concatenate([zeros, flags_trim, ones], axis=1)
    probs = jax.nn.softmax(logits, axis=2)
    residuals = jnp.cumprod(1.0 - flags[:, :-1], axis=1)
    return probs * flags[:, 1:] * residuals


if __name__ == "__main__":
    T, O, WIDTH = 8, 16, 32          # num_steps, num_outputs, MLP width

    key = jax.random.PRNGKey(0)
    k1, k2, k3, k4, k5 = jax.random.split(key, 5)

    # Deterministic synthetic parameters (shapes from the module __init__).
    w1 = jax.random.uniform(k2, (WIDTH, 1), jnp.float32, -1.0, 1.0)
    b1 = jax.random.uniform(k3, (WIDTH,), jnp.float32, -1.0, 1.0)
    bound = 1.0 / math.sqrt(WIDTH)
    w2 = jax.random.uniform(k4, (1, WIDTH), jnp.float32, -bound, bound)
    b2 = jax.random.uniform(k5, (1,), jnp.float32, -bound, bound)

    # Small shape (single full-array block) and a larger shape that exercises
    # the multi-block, multi-grid-step path.
    for B in (2, 2048):
        kx = jax.random.fold_in(k1, B)
        logits = jax.random.normal(kx, (B, T, O), jnp.float32)
        out = jax.block_until_ready(soft_length(logits, w1, b1, w2, b2))
        ref = soft_length_ref(logits, w1, b1, w2, b2)
        np.testing.assert_allclose(np.asarray(out), np.asarray(ref),
                                   rtol=1e-4, atol=1e-6)

    print("KERNEL_OK")
</pallas_src>

<mosaic_0001>
module attributes {stable_mosaic.version = 11 : i64} {
  func.func @_soft_length_kernel(%arg0: i32, %arg1: memref<8x128xf32, #tpu.memory_space<vmem>>, %arg2: memref<8x128xf32, #tpu.memory_space<vmem>>, %arg3: memref<128x128xf32, #tpu.memory_space<vmem>>, %arg4: memref<128x128xf32, #tpu.memory_space<vmem>>, %arg5: memref<8x128xf32, #tpu.memory_space<vmem>>) attributes {dimension_semantics = [#tpu.dimension_semantics<parallel>], iteration_bounds = array<i64: 1>, scalar_prefetch = 0 : i64, scratch_operands = 0 : i64, tpu.core_type = #tpu.core_type<tc>, window_params = [{transform_indices = @transform_0, window_bounds = array<i64: 8, 128>}, {pipeline_mode = #tpu.pipeline_mode<synchronous>, transform_indices = @transform_1, window_bounds = array<i64: 8, 128>}, {pipeline_mode = #tpu.pipeline_mode<synchronous>, transform_indices = @transform_2, window_bounds = array<i64: 128, 128>}, {pipeline_mode = #tpu.pipeline_mode<synchronous>, transform_indices = @transform_3, window_bounds = array<i64: 128, 128>}, {transform_indices = @transform_4, window_bounds = array<i64: 8, 128>}]} {
    %c0 = arith.constant 0 : index
    %c0_0 = arith.constant 0 : index
    %0 = vector.load %arg1[%c0, %c0_0] : memref<8x128xf32, #tpu.memory_space<vmem>>, vector<8x128xf32>
    %c0_1 = arith.constant 0 : index
    %c0_2 = arith.constant 0 : index
    %1 = vector.load %arg3[%c0_1, %c0_2] : memref<128x128xf32, #tpu.memory_space<vmem>>, vector<128x128xf32>
    %c0_3 = arith.constant 0 : index
    %c0_4 = arith.constant 0 : index
    %2 = vector.load %arg4[%c0_3, %c0_4] : memref<128x128xf32, #tpu.memory_space<vmem>>, vector<128x128xf32>
    %cst = arith.constant dense<0xFF800000> : vector<8xf32>
    %3 = vector.multi_reduction <maximumf>, %0, %cst [1] : vector<8x128xf32> to vector<8xf32>
    %4 = vector.shape_cast %3 : vector<8xf32> to vector<8x1xf32>
    %5 = vector.broadcast %4 : vector<8x1xf32> to vector<8x128xf32>
    %6 = arith.subf %0, %5 : vector<8x128xf32>
    %7 = math.exp %6 : vector<8x128xf32>
    %cst_5 = arith.constant dense<0.000000e+00> : vector<8x128xf32>
    %8 = tpu.matmul %7, %1, %cst_5 {dimension_numbers = #tpu.dot_dimension_numbers<[1], [0], [0], [1], [0, 0, 1, 1], [], []>, precision = #tpu.contract_precision<fp32>} : vector<8x128xf32>, vector<128x128xf32>, vector<8x128xf32> -> vector<8x128xf32>
    %9 = tpu.reciprocal %8 {approx = true} : vector<8x128xf32> -> vector<8x128xf32>
    %10 = arith.mulf %8, %9 : vector<8x128xf32>
    %cst_6 = arith.constant 2.000000e+00 : f32
    %11 = vector.broadcast %cst_6 : f32 to vector<8x128xf32>
    %12 = arith.subf %11, %10 : vector<8x128xf32>
    %13 = arith.mulf %9, %12 : vector<8x128xf32>
    %14 = arith.mulf %7, %13 : vector<8x128xf32>
    %15 = math.log %8 : vector<8x128xf32>
    %16 = vector.broadcast %4 : vector<8x1xf32> to vector<8x128xf32>
    %17 = arith.addf %16, %15 : vector<8x128xf32>
    %18 = arith.subf %17, %0 : vector<8x128xf32>
    %19 = arith.mulf %14, %18 : vector<8x128xf32>
    %cst_7 = arith.constant dense<0.000000e+00> : vector<8x128xf32>
    %20 = tpu.matmul %19, %1, %cst_7 {dimension_numbers = #tpu.dot_dimension_numbers<[1], [0], [0], [1], [0, 0, 1, 1], [], []>, precision = #tpu.contract_precision<fp32>} : vector<8x128xf32>, vector<128x128xf32>, vector<8x128xf32> -> vector<8x128xf32>
    %cst_8 = arith.constant 0.9617967 : f32
    %21 = vector.broadcast %cst_8 : f32 to vector<8x128xf32>
    %22 = arith.mulf %20, %21 : vector<8x128xf32>
    %cst_9 = arith.constant 1.000000e+00 : f32
    %23 = vector.broadcast %cst_9 : f32 to vector<8x128xf32>
    %24 = arith.subf %22, %23 : vector<8x128xf32>
    %c0_10 = arith.constant 0 : index
    %c0_11 = arith.constant 0 : index
    %25 = vector.load %arg2[%c0_10, %c0_11] : memref<8x128xf32, #tpu.memory_space<vmem>>, vector<1x128xf32>
    %c2 = arith.constant 2 : index
    %c0_12 = arith.constant 0 : index
    %26 = vector.load %arg2[%c2, %c0_12] : memref<8x128xf32, #tpu.memory_space<vmem>>, vector<1x128xf32>
    %c4 = arith.constant 4 : index
    %c0_13 = arith.constant 0 : index
    %27 = vector.load %arg2[%c4, %c0_13] : memref<8x128xf32, #tpu.memory_space<vmem>>, vector<1x128xf32>
    %28 = vector.broadcast %25 : vector<1x128xf32> to vector<8x128xf32>
    %29 = arith.mulf %24, %28 : vector<8x128xf32>
    %30 = vector.broadcast %26 : vector<1x128xf32> to vector<8x128xf32>
    %31 = arith.addf %29, %30 : vector<8x128xf32>
    %cst_14 = arith.constant 0.000000e+00 : f32
    %32 = vector.broadcast %cst_14 : f32 to vector<8x128xf32>
    %33 = arith.maximumf %31, %32 : vector<8x128xf32>
    %34 = vector.broadcast %27 : vector<1x128xf32> to vector<8x128xf32>
    %35 = arith.mulf %33, %34 : vector<8x128xf32>
    %c1 = arith.constant 1 : index
    %c0_15 = arith.constant 0 : index
    %36 = vector.load %arg2[%c1, %c0_15] : memref<8x128xf32, #tpu.memory_space<vmem>>, vector<1x128xf32>
    %c3 = arith.constant 3 : index
    %c0_16 = arith.constant 0 : index
    %37 = vector.load %arg2[%c3, %c0_16] : memref<8x128xf32, #tpu.memory_space<vmem>>, vector<1x128xf32>
    %c5 = arith.constant 5 : index
    %c0_17 = arith.constant 0 : index
    %38 = vector.load %arg2[%c5, %c0_17] : memref<8x128xf32, #tpu.memory_space<vmem>>, vector<1x128xf32>
    %39 = vector.broadcast %36 : vector<1x128xf32> to vector<8x128xf32>
    %40 = arith.mulf %24, %39 : vector<8x128xf32>
    %41 = vector.broadcast %37 : vector<1x128xf32> to vector<8x128xf32>
    %42 = arith.addf %40, %41 : vector<8x128xf32>
    %cst_18 = arith.constant 0.000000e+00 : f32
    %43 = vector.broadcast %cst_18 : f32 to vector<8x128xf32>
    %44 = arith.maximumf %42, %43 : vector<8x128xf32>
    %45 = vector.broadcast %38 : vector<1x128xf32> to vector<8x128xf32>
    %46 = arith.mulf %44, %45 : vector<8x128xf32>
    %47 = arith.addf %35, %46 : vector<8x128xf32>
    %c6 = arith.constant 6 : index
    %c0_19 = arith.constant 0 : index
    %48 = vector.load %arg2[%c6, %c0_19] : memref<8x128xf32, #tpu.memory_space<vmem>>, vector<1x128xf32>
    %c7 = arith.constant 7 : index
    %c0_20 = arith.constant 0 : index
    %49 = vector.load %arg2[%c7, %c0_20] : memref<8x128xf32, #tpu.memory_space<vmem>>, vector<1x128xf32>
    %cst_21 = arith.constant dense<0.000000e+00> : vector<8x128xf32>
    %50 = tpu.matmul %47, %1, %cst_21 {dimension_numbers = #tpu.dot_dimension_numbers<[1], [0], [0], [1], [0, 0, 1, 1], [], []>, precision = #tpu.contract_precision<fp32>} : vector<8x128xf32>, vector<128x128xf32>, vector<8x128xf32> -> vector<8x128xf32>
    %51 = vector.broadcast %48 : vector<1x128xf32> to vector<8x128xf32>
    %52 = arith.addf %50, %51 : vector<8x128xf32>
    %53 = math.absf %52 : vector<8x128xf32>
    %cst_22 = arith.constant 0.000000e+00 : f32
    %54 = vector.broadcast %cst_22 : f32 to vector<8x128xf32>
    %55 = arith.subf %54, %53 : vector<8x128xf32>
    %56 = math.exp %55 : vector<8x128xf32>
    %cst_23 = arith.constant 1.000000e+00 : f32
    %57 = vector.broadcast %cst_23 : f32 to vector<8x128xf32>
    %58 = arith.addf %57, %56 : vector<8x128xf32>
    %59 = tpu.reciprocal %58 {approx = true} : vector<8x128xf32> -> vector<8x128xf32>
    %60 = arith.mulf %58, %59 : vector<8x128xf32>
    %cst_24 = arith.constant 2.000000e+00 : f32
    %61 = vector.broadcast %cst_24 : f32 to vector<8x128xf32>
    %62 = arith.subf %61, %60 : vector<8x128xf32>
    %63 = arith.mulf %59, %62 : vector<8x128xf32>
    %cst_25 = arith.constant 0.000000e+00 : f32
    %64 = vector.broadcast %cst_25 : f32 to vector<8x128xf32>
    %65 = arith.cmpf oge, %52, %64 : vector<8x128xf32>
    %66 = arith.mulf %56, %63 : vector<8x128xf32>
    %67 = arith.select %65, %63, %66 : vector<8x128xi1>, vector<8x128xf32>
    %cst_26 = arith.constant 1.000000e+00 : f32
    %68 = vector.broadcast %cst_26 : f32 to vector<8x128xf32>
    %69 = arith.subf %68, %67 : vector<8x128xf32>
    %70 = vector.broadcast %49 : vector<1x128xf32> to vector<8x128xf32>
    %71 = arith.mulf %70, %69 : vector<8x128xf32>
    %72 = arith.addf %67, %71 : vector<8x128xf32>
    %cst_27 = arith.constant 0.000000e+00 : f32
    %73 = vector.broadcast %cst_27 : f32 to vector<8x128xf32>
    %74 = arith.maximumf %52, %73 : vector<8x128xf32>
    %cst_28 = arith.constant 1.000000e+00 : f32
    %75 = vector.broadcast %cst_28 : f32 to vector<8x128xf32>
    %76 = arith.addf %75, %56 : vector<8x128xf32>
    %77 = math.log %76 : vector<8x128xf32>
    %78 = arith.addf %74, %77 : vector<8x128xf32>
    %cst_29 = arith.constant dense<0.000000e+00> : vector<8x128xf32>
    %79 = tpu.matmul %78, %2, %cst_29 {dimension_numbers = #tpu.dot_dimension_numbers<[1], [0], [0], [1], [0, 0, 1, 1], [], []>, precision = #tpu.contract_precision<fp32>} : vector<8x128xf32>, vector<128x128xf32>, vector<8x128xf32> -> vector<8x128xf32>
    %cst_30 = arith.constant 0.000000e+00 : f32
    %80 = vector.broadcast %cst_30 : f32 to vector<8x128xf32>
    %81 = arith.subf %80, %79 : vector<8x128xf32>
    %82 = math.exp %81 : vector<8x128xf32>
    %83 = arith.mulf %72, %82 : vector<8x128xf32>
    %84 = arith.mulf %14, %83 : vector<8x128xf32>
    %c0_31 = arith.constant 0 : index
    %c0_32 = arith.constant 0 : index
    %85 = vector.load %arg5[%c0_31, %c0_32] : memref<8x128xf32, #tpu.memory_space<vmem>>, vector<8x128xf32>
    tpu.vector_store %arg5[%c0_31, %c0_32], %84 {strides = array<i32>} : memref<8x128xf32, #tpu.memory_space<vmem>>, vector<8x128xf32>,
    return
  }
  func.func @transform_0(%arg0: i32) -> (i32, i32) {
    %c0_i32 = arith.constant 0 : i32
    %c0_i32_0 = arith.constant 0 : i32
    return %arg0, %c0_i32 : i32, i32
  }
  func.func @transform_1(%arg0: i32) -> (i32, i32) {
    %c0_i32 = arith.constant 0 : i32
    %c0_i32_0 = arith.constant 0 : i32
    %c0_i32_1 = arith.constant 0 : i32
    return %c0_i32, %c0_i32_0 : i32, i32
  }
  func.func @transform_2(%arg0: i32) -> (i32, i32) {
    %c0_i32 = arith.constant 0 : i32
    %c0_i32_0 = arith.constant 0 : i32
    %c0_i32_1 = arith.constant 0 : i32
    return %c0_i32, %c0_i32_0 : i32, i32
  }
  func.func @transform_3(%arg0: i32) -> (i32, i32) {
    %c0_i32 = arith.constant 0 : i32
    %c0_i32_0 = arith.constant 0 : i32
    %c0_i32_1 = arith.constant 0 : i32
    return %c0_i32, %c0_i32_0 : i32, i32
  }
  func.func @transform_4(%arg0: i32) -> (i32, i32) {
    %c0_i32 = arith.constant 0 : i32
    %c0_i32_0 = arith.constant 0 : i32
    return %arg0, %c0_i32 : i32, i32
  }
}

</mosaic_0001>

<llo_original>
// kernel: tpu_custom_call.1
$region0: #{tpu_custom_call.1}
  #allocation0 [shape = 'u32[]', space=smem, size = 0x4, offset = 0x4, fixed_abs, tag = 'smem constant byte address 0x4 - core index']
  #allocation1 [shape = 'u32[144,128]{1,0:T(1,128)}', space=vmem, size = 0x12000, scoped, tag = 'internal scratch']
  %s0 = inlined_call_operand.hbm [shape: f32[8,128], index: 0, kind: input, shape index: {}]
  %s1 = inlined_call_operand.hbm [shape: f32[8,128], index: 1, kind: input, shape index: {}]
  %s2 = inlined_call_operand.hbm [shape: f32[128,128], index: 2, kind: input, shape index: {}]
  %s3 = inlined_call_operand.hbm [shape: f32[128,128], index: 3, kind: input, shape index: {}]
  %s4 = inlined_call_operand.hbm [shape: f32[8,128], index: 4, kind: output, shape index: {}]
  %s5 = sld [smem:[#allocation0]]
  $region42: #{tpu_custom_call.1} parent=0
    _
  %s7 = ssub.s32 1, %s5
  %s8 = scalar_select 0, %s7, %s5
  $region1: #{tpu_custom_call.1} parent=0
    #allocation2 [shape = 'u8[4096]{0}', space=vmem, size = 0x1000, scoped, tag = 'input window, operand 0, single buffered']
    #allocation3 [shape = 's32[1]{0}', space=sflag, size = 0x4, scoped, tag = 'scoped memory for tpu_custom_call.1']
    #allocation4 [shape = 's32[1]{0}', space=sflag, size = 0x4, scoped, tag = 'scoped memory for tpu_custom_call.1']
    #allocation5 [shape = 'u8[4096]{0}', space=vmem, size = 0x1000, scoped, tag = 'input window, operand 1, single buffered']
    #allocation6 [shape = 's32[1]{0}', space=sflag, size = 0x4, scoped, tag = 'scoped memory for tpu_custom_call.1']
    #allocation7 [shape = 'u8[65536]{0}', space=vmem, size = 0x10000, scoped, tag = 'input window, operand 2, single buffered']
    #allocation8 [shape = 'u8[65536]{0}', space=vmem, size = 0x10000, scoped, tag = 'input window, operand 3, single buffered']
    #allocation9 [shape = 's32[1]{0}', space=sflag, size = 0x4, scoped, tag = 'scoped memory for tpu_custom_call.1']
    #allocation10 [shape = 'u8[4096]{0}', space=vmem, size = 0x1000, scoped, tag = 'output window, operand 0, single buffered']
    %9 = vsyncpa [#allocation3], 0
    %10 = vsyncpa [#allocation6], 0
    %11 = vsyncpa [#allocation9], 0
    %12 = vsyncpa [#allocation4], 0
    // Predicated region
    $region2: #{tpu_custom_call.1} parent=1 // pred_check
      _
    $region3: #{tpu_custom_call.1} parent=1 // pred_check_branch
      %14 = sbr.rel (0) target = $region5
    $region4: #{tpu_custom_call.1} parent=1 // pred_region
      %s16 = ssub.s32 128, 128
      %17 = vsyncadd [#allocation3], %s16
      %s19 = sshll.u32 [#allocation2], 4
      %s20 = int_to_ptr.vmem [resolvable:$true] %s19
      %22 = dma.hbm_to_vmem [thread:$0]  %s0, 128, %s20, [#allocation3]
    $region5: #{tpu_custom_call.1} parent=1 // pred_fallthru
      _
    // Predicated region
    $region6: #{tpu_custom_call.1} parent=1 // pred_check
      _
    $region7: #{tpu_custom_call.1} parent=1 // pred_check_branch
      %24 = sbr.rel (0) target = $region9
    $region8: #{tpu_custom_call.1} parent=1 // pred_region
      %s26 = ssub.s32 128, 128
      %27 = vsyncadd [#allocation6], %s26
      %s29 = sshll.u32 [#allocation5], 4
      %s30 = int_to_ptr.vmem [resolvable:$true] %s29
      %32 = dma.hbm_to_vmem [thread:$0]  %s1, 128, %s30, [#allocation6]
    $region9: #{tpu_custom_call.1} parent=1 // pred_fallthru
      _
    // Predicated region
    $region10: #{tpu_custom_call.1} parent=1 // pred_check
      _
    $region11: #{tpu_custom_call.1} parent=1 // pred_check_branch
      %34 = sbr.rel (0) target = $region13
    $region12: #{tpu_custom_call.1} parent=1 // pred_region
      %s36 = ssub.s32 2048, 2048
      %37 = vsyncadd [#allocation6], %s36
      %s38 = sshll.u32 [#allocation7], 4
      %s39 = int_to_ptr.vmem [resolvable:$true] %s38
      %44 = dma.hbm_to_vmem [thread:$0]  %s2, 2048, %s39, [#allocation6], 128, 128, 8
    $region13: #{tpu_custom_call.1} parent=1 // pred_fallthru
      _
    // Predicated region
    $region14: #{tpu_custom_call.1} parent=1 // pred_check
      _
    $region15: #{tpu_custom_call.1} parent=1 // pred_check_branch
      %46 = sbr.rel (0) target = $region17
    $region16: #{tpu_custom_call.1} parent=1 // pred_region
      %s48 = ssub.s32 2048, 2048
      %49 = vsyncadd [#allocation9], %s48
      %s50 = sshll.u32 [#allocation8], 4
      %s51 = int_to_ptr.vmem [resolvable:$true] %s50
      %56 = dma.hbm_to_vmem [thread:$0]  %s3, 2048, %s51, [#allocation9], 128, 128, 8
    $region17: #{tpu_custom_call.1} parent=1 // pred_fallthru
      _
    // Predicated region
    $region18: #{tpu_custom_call.1} parent=1 // pred_check
      _
    $region19: #{tpu_custom_call.1} parent=1 // pred_check_branch
      %58 = sbr.rel (0) target = $region21
    $region20: #{tpu_custom_call.1} parent=1 // pred_region
      %59 = dma.done [#allocation3], 128
    $region21: #{tpu_custom_call.1} parent=1 // pred_fallthru
      _
    // Predicated region
    $region22: #{tpu_custom_call.1} parent=1 // pred_check
      _
    $region23: #{tpu_custom_call.1} parent=1 // pred_check_branch
      %61 = sbr.rel (0) target = $region25
    $region24: #{tpu_custom_call.1} parent=1 // pred_region
      %62 = dma.done [#allocation6], 128
    $region25: #{tpu_custom_call.1} parent=1 // pred_fallthru
      _
    // Predicated region
    $region26: #{tpu_custom_call.1} parent=1 // pred_check
      _
    $region27: #{tpu_custom_call.1} parent=1 // pred_check_branch
      %64 = sbr.rel (0) target = $region29
    $region28: #{tpu_custom_call.1} parent=1 // pred_region
      %65 = dma.done [#allocation6], 2048
    $region29: #{tpu_custom_call.1} parent=1 // pred_fallthru
      _
    // Predicated region
    $region30: #{tpu_custom_call.1} parent=1 // pred_check
      _
    $region31: #{tpu_custom_call.1} parent=1 // pred_check_branch
      %67 = sbr.rel (0) target = $region33
    $region32: #{tpu_custom_call.1} parent=1 // pred_region
      %68 = dma.done [#allocation9], 2048
    $region33: #{tpu_custom_call.1} parent=1 // pred_fallthru
      _
    %v69 = vld [vmem:[#allocation2] sm:$0xff]
    %v70 = vld [vmem:[#allocation7] sm:$0xff]
    %v71 = vld [vmem:[#allocation7 + $0x8] sm:$0xff]
    %v72 = vld [vmem:[#allocation7 + $0x10] sm:$0xff]
    %v73 = vld [vmem:[#allocation7 + $0x18] sm:$0xff]
    %v74 = vld [vmem:[#allocation7 + $0x20] sm:$0xff]
    %v75 = vld [vmem:[#allocation7 + $0x28] sm:$0xff]
    %v76 = vld [vmem:[#allocation7 + $0x30] sm:$0xff]
    %v77 = vld [vmem:[#allocation7 + $0x38] sm:$0xff]
    %v78 = vld [vmem:[#allocation7 + $0x40] sm:$0xff]
    %v79 = vld [vmem:[#allocation7 + $0x48] sm:$0xff]
    %v80 = vld [vmem:[#allocation7 + $0x50] sm:$0xff]
    %v81 = vld [vmem:[#allocation7 + $0x58] sm:$0xff]
    %v82 = vld [vmem:[#allocation7 + $0x60] sm:$0xff]
    %v83 = vld [vmem:[#allocation7 + $0x68] sm:$0xff]
    %v84 = vld [vmem:[#allocation7 + $0x70] sm:$0xff]
    %v85 = vld [vmem:[#allocation7 + $0x78] sm:$0xff]
    %v86 = vld [vmem:[#allocation8] sm:$0xff]
    %v87 = vld [vmem:[#allocation8 + $0x8] sm:$0xff]
    %v88 = vld [vmem:[#allocation8 + $0x10] sm:$0xff]
    %v89 = vld [vmem:[#allocation8 + $0x18] sm:$0xff]
    %v90 = vld [vmem:[#allocation8 + $0x20] sm:$0xff]
    %v91 = vld [vmem:[#allocation8 + $0x28] sm:$0xff]
    %v92 = vld [vmem:[#allocation8 + $0x30] sm:$0xff]
    %v93 = vld [vmem:[#allocation8 + $0x38] sm:$0xff]
    %v94 = vld [vmem:[#allocation8 + $0x40] sm:$0xff]
    %v95 = vld [vmem:[#allocation8 + $0x48] sm:$0xff]
    %v96 = vld [vmem:[#allocation8 + $0x50] sm:$0xff]
    %v97 = vld [vmem:[#allocation8 + $0x58] sm:$0xff]
    %v98 = vld [vmem:[#allocation8 + $0x60] sm:$0xff]
    %v99 = vld [vmem:[#allocation8 + $0x68] sm:$0xff]
    %v100 = vld [vmem:[#allocation8 + $0x70] sm:$0xff]
    %v101 = vld [vmem:[#allocation8 + $0x78] sm:$0xff]
    %102 = vmax.xlane.f32.xlu0 %v69
    %v103 = vpop.xlane.xlu0 %102
    %v104 = vsub.f32 %v69, %v103
    %v105 = vmul.f32 %v104, 1.442695
    %v106 = vpow.pop %v105
    %107 = vmatprep.subr.mxu0 0.0
    %v108 = vand.u32 %v85, 4294901760
    %109 = vmatpush1.msra.mxu0 %v108
    %110 = vmatprep.subr.mxu0 0.0
    %v111 = vand.u32 %v84, 4294901760
    %112 = vmatpush1.msra.mxu0 %v111
    %113 = vmatprep.subr.mxu0 0.0
    %v114 = vand.u32 %v83, 4294901760
    %115 = vmatpush1.msra.mxu0 %v114
    %116 = vmatprep.subr.mxu0 0.0
    %v117 = vand.u32 %v82, 4294901760
    %118 = vmatpush1.msra.mxu0 %v117
    %119 = vmatprep.subr.mxu0 0.0
    %v120 = vand.u32 %v81, 4294901760
    %121 = vmatpush1.msra.mxu0 %v120
    %122 = vmatprep.subr.mxu0 0.0
    %v123 = vand.u32 %v80, 4294901760
    %124 = vmatpush1.msra.mxu0 %v123
    %125 = vmatprep.subr.mxu0 0.0
    %v126 = vand.u32 %v79, 4294901760
    %127 = vmatpush1.msra.mxu0 %v126
    %128 = vmatprep.subr.mxu0 0.0
    %v129 = vand.u32 %v78, 4294901760
    %130 = vmatpush1.msra.mxu0 %v129
    %131 = vmatprep.subr.mxu0 0.0
    %v132 = vand.u32 %v77, 4294901760
    %133 = vmatpush1.msra.mxu0 %v132
    %134 = vmatprep.subr.mxu0 0.0
    %v135 = vand.u32 %v76, 4294901760
    %136 = vmatpush1.msra.mxu0 %v135
    %137 = vmatprep.subr.mxu0 0.0
    %v138 = vand.u32 %v75, 4294901760
    %139 = vmatpush1.msra.mxu0 %v138
    %140 = vmatprep.subr.mxu0 0.0
    %v141 = vand.u32 %v74, 4294901760
    %142 = vmatpush1.msra.mxu0 %v141
    %143 = vmatprep.subr.mxu0 0.0
    %v144 = vand.u32 %v73, 4294901760
    %145 = vmatpush1.msra.mxu0 %v144
    %146 = vmatprep.subr.mxu0 0.0
    %v147 = vand.u32 %v72, 4294901760
    %148 = vmatpush1.msra.mxu0 %v147
    %149 = vmatprep.subr.mxu0 0.0
    %v150 = vand.u32 %v71, 4294901760
    %151 = vmatpush1.msra.mxu0 %v150
    %152 = vmatprep.subr.mxu0 0.0
    %v153 = vand.u32 %v70, 4294901760
    %154 = vmatpush1.msra.mxu0 %v153
    %155 = vmatprep.subr.mxu0 0.0
    %156 = vmatpush2.msra.mxu0 0.0
    %157 = vmatprep.subr.mxu0 0.0
    %158 = vmatpush2.msra.mxu0 0.0
    %159 = vmatprep.subr.mxu0 0.0
    %160 = vmatpush2.msra.mxu0 0.0
    %161 = vmatprep.subr.mxu0 0.0
    %162 = vmatpush2.msra.mxu0 0.0
    %163 = vmatprep.subr.mxu0 0.0
    %164 = vmatpush2.msra.mxu0 0.0
    %165 = vmatprep.subr.mxu0 0.0
    %166 = vmatpush2.msra.mxu0 0.0
    %167 = vmatprep.subr.mxu0 0.0
    %168 = vmatpush2.msra.mxu0 0.0
    %169 = vmatprep.subr.mxu0 0.0
    %170 = vmatpush2.msra.mxu0 0.0
    %171 = vmatprep.subr.mxu0 0.0
    %172 = vmatpush2.msra.mxu0 0.0
    %173 = vmatprep.subr.mxu0 0.0
    %174 = vmatpush2.msra.mxu0 0.0
    %175 = vmatprep.subr.mxu0 0.0
    %176 = vmatpush2.msra.mxu0 0.0
    %177 = vmatprep.subr.mxu0 0.0
    %178 = vmatpush2.msra.mxu0 0.0
    %179 = vmatprep.subr.mxu0 0.0
    %180 = vmatpush2.msra.mxu0 0.0
    %181 = vmatprep.subr.mxu0 0.0
    %182 = vmatpush2.msra.mxu0 0.0
    %183 = vmatprep.subr.mxu0 0.0
    %184 = vmatpush2.msra.mxu0 0.0
    %185 = vmatprep.subr.mxu0 0.0
    %186 = vmatpush2.msra.mxu0 0.0
    %187 = vmatprep.mubr.f32.mxu0 0.0
    %v188 = vand.u32 %v106, 4294901760
    %v189 = vsub.f32 %v106, %v188
    %v190 = vand.u32 %v189, 4294901760
    %v191 = vsub.f32 %v189, %v190
    %v192 = vand.u32 %v191, 4294901760
    %193 = vmatmul.mubr.f32.gmra.mxu0 %v192
    %v194 = vpop.f32.mrf.mxu0
    %v195 = vadd.f32 0.0, %v194
    %v196 = vpop.f32.mrf.mxu0
    %197 = vdwg.mxu0
    %198 = vmatprep.subr.mxu0 0.0
    %v199 = vand.u32 %v85, 4294901760
    %v200 = vsub.f32 %v85, %v199
    %v201 = vand.u32 %v200, 4294901760
    %v202 = vsub.f32 %v200, %v201
    %v203 = vand.u32 %v202, 4294901760
    %204 = vmatpush1.msra.mxu0 %v203
    %205 = vmatprep.subr.mxu0 0.0
    %v206 = vand.u32 %v84, 4294901760
    %v207 = vsub.f32 %v84, %v206
    %v208 = vand.u32 %v207, 4294901760
    %v209 = vsub.f32 %v207, %v208
    %v210 = vand.u32 %v209, 4294901760
    %211 = vmatpush1.msra.mxu0 %v210
    %212 = vmatprep.subr.mxu0 0.0
    %v213 = vand.u32 %v83, 4294901760
    %v214 = vsub.f32 %v83, %v213
    %v215 = vand.u32 %v214, 4294901760
    %v216 = vsub.f32 %v214, %v215
    %v217 = vand.u32 %v216, 4294901760
    %218 = vmatpush1.msra.mxu0 %v217
    %219 = vmatprep.subr.mxu0 0.0
    %v220 = vand.u32 %v82, 4294901760
    %v221 = vsub.f32 %v82, %v220
    %v222 = vand.u32 %v221, 4294901760
    %v223 = vsub.f32 %v221, %v222
    %v224 = vand.u32 %v223, 4294901760
    %225 = vmatpush1.msra.mxu0 %v224
    %226 = vmatprep.subr.mxu0 0.0
    %v227 = vand.u32 %v81, 4294901760
    %v228 = vsub.f32 %v81, %v227
    %v229 = vand.u32 %v228, 4294901760
    %v230 = vsub.f32 %v228, %v229
    %v231 = vand.u32 %v230, 4294901760
    %232 = vmatpush1.msra.mxu0 %v231
    %233 = vmatprep.subr.mxu0 0.0
    %v234 = vand.u32 %v80, 4294901760
    %v235 = vsub.f32 %v80, %v234
    %v236 = vand.u32 %v235, 4294901760
    %v237 = vsub.f32 %v235, %v236
    %v238 = vand.u32 %v237, 4294901760
    %239 = vmatpush1.msra.mxu0 %v238
    %240 = vmatprep.subr.mxu0 0.0
    %v241 = vand.u32 %v79, 4294901760
    %v242 = vsub.f32 %v79, %v241
    %v243 = vand.u32 %v242, 4294901760
    %v244 = vsub.f32 %v242, %v243
    %v245 = vand.u32 %v244, 4294901760
    %246 = vmatpush1.msra.mxu0 %v245
    %247 = vmatprep.subr.mxu0 0.0
    %v248 = vand.u32 %v78, 4294901760
    %v249 = vsub.f32 %v78, %v248
    %v250 = vand.u32 %v249, 4294901760
    %v251 = vsub.f32 %v249, %v250
    %v252 = vand.u32 %v251, 4294901760
    %253 = vmatpush1.msra.mxu0 %v252
    %254 = vmatprep.subr.mxu0 0.0
    %v255 = vand.u32 %v77, 4294901760
    %v256 = vsub.f32 %v77, %v255
    %v257 = vand.u32 %v256, 4294901760
    %v258 = vsub.f32 %v256, %v257
    %v259 = vand.u32 %v258, 4294901760
    %260 = vmatpush1.msra.mxu0 %v259
    %261 = vmatprep.subr.mxu0 0.0
    %v262 = vand.u32 %v76, 4294901760
    %v263 = vsub.f32 %v76, %v262
    %v264 = vand.u32 %v263, 4294901760
    %v265 = vsub.f32 %v263, %v264
    %v266 = vand.u32 %v265, 4294901760
    %267 = vmatpush1.msra.mxu0 %v266
    %268 = vmatprep.subr.mxu0 0.0
    %v269 = vand.u32 %v75, 4294901760
    %v270 = vsub.f32 %v75, %v269
    %v271 = vand.u32 %v270, 4294901760
    %v272 = vsub.f32 %v270, %v271
    %v273 = vand.u32 %v272, 4294901760
    %274 = vmatpush1.msra.mxu0 %v273
    %275 = vmatprep.subr.mxu0 0.0
    %v276 = vand.u32 %v74, 4294901760
    %v277 = vsub.f32 %v74, %v276
    %v278 = vand.u32 %v277, 4294901760
    %v279 = vsub.f32 %v277, %v278
    %v280 = vand.u32 %v279, 4294901760
    %281 = vmatpush1.msra.mxu0 %v280
    %282 = vmatprep.subr.mxu0 0.0
    %v283 = vand.u32 %v73, 4294901760
    %v284 = vsub.f32 %v73, %v283
    %v285 = vand.u32 %v284, 4294901760
    %v286 = vsub.f32 %v284, %v285
    %v287 = vand.u32 %v286, 4294901760
    %288 = vmatpush1.msra.mxu0 %v287
    %289 = vmatprep.subr.mxu0 0.0
    %v290 = vand.u32 %v72, 4294901760
    %v291 = vsub.f32 %v72, %v290
    %v292 = vand.u32 %v291, 4294901760
    %v293 = vsub.f32 %v291, %v292
    %v294 = vand.u32 %v293, 4294901760
    %295 = vmatpush1.msra.mxu0 %v294
    %296 = vmatprep.subr.mxu0 0.0
    %v297 = vand.u32 %v71, 4294901760
    %v298 = vsub.f32 %v71, %v297
    %v299 = vand.u32 %v298, 4294901760
    %v300 = vsub.f32 %v298, %v299
    %v301 = vand.u32 %v300, 4294901760
    %302 = vmatpush1.msra.mxu0 %v301
    %303 = vmatprep.subr.mxu0 0.0
    %v304 = vand.u32 %v70, 4294901760
    %v305 = vsub.f32 %v70, %v304
    %v306 = vand.u32 %v305, 4294901760
    %v307 = vsub.f32 %v305, %v306
    %v308 = vand.u32 %v307, 4294901760
    %309 = vmatpush1.msra.mxu0 %v308
    %310 = vmatprep.subr.mxu0 0.0
    %311 = vmatpush2.msra.mxu0 0.0
    %312 = vmatprep.subr.mxu0 0.0
    %313 = vmatpush2.msra.mxu0 0.0
    %314 = vmatprep.subr.mxu0 0.0
    %315 = vmatpush2.msra.mxu0 0.0
    %316 = vmatprep.subr.mxu0 0.0
    %317 = vmatpush2.msra.mxu0 0.0
    %318 = vmatprep.subr.mxu0 0.0
    %319 = vmatpush2.msra.mxu0 0.0
    %320 = vmatprep.subr.mxu0 0.0
    %321 = vmatpush2.msra.mxu0 0.0
    %322 = vmatprep.subr.mxu0 0.0
    %323 = vmatpush2.msra.mxu0 0.0
    %324 = vmatprep.subr.mxu0 0.0
    %325 = vmatpush2.msra.mxu0 0.0
    %326 = vmatprep.subr.mxu0 0.0
    %327 = vmatpush2.msra.mxu0 0.0
    %328 = vmatprep.subr.mxu0 0.0
    %329 = vmatpush2.msra.mxu0 0.0
    %330 = vmatprep.subr.mxu0 0.0
    %331 = vmatpush2.msra.mxu0 0.0
    %332 = vmatprep.subr.mxu0 0.0
    %333 = vmatpush2.msra.mxu0 0.0
    %334 = vmatprep.subr.mxu0 0.0
    %335 = vmatpush2.msra.mxu0 0.0
    %336 = vmatprep.subr.mxu0 0.0
    %337 = vmatpush2.msra.mxu0 0.0
    %338 = vmatprep.subr.mxu0 0.0
    %339 = vmatpush2.msra.mxu0 0.0
    %340 = vmatprep.subr.mxu0 0.0
    %341 = vmatpush2.msra.mxu0 0.0
    %342 = vmatprep.mubr.f32.mxu0 0.0
    %v343 = vand.u32 %v106, 4294901760
    %344 = vmatmul.mubr.f32.gmra.mxu0 %v343
    %v345 = vpop.f32.mrf.mxu0
    %v346 = vadd.f32 %v195, %v345
    %v347 = vpop.f32.mrf.mxu0
    %348 = vdwg.mxu0
    %349 = vmatprep.subr.mxu0 0.0
    %v350 = vand.u32 %v85, 4294901760
    %v351 = vsub.f32 %v85, %v350
    %352 = vmatpush1.msra.mxu0 %v351
    %353 = vmatprep.subr.mxu0 0.0
    %v354 = vand.u32 %v84, 4294901760
    %v355 = vsub.f32 %v84, %v354
    %356 = vmatpush1.msra.mxu0 %v355
    %357 = vmatprep.subr.mxu0 0.0
    %v358 = vand.u32 %v83, 4294901760
    %v359 = vsub.f32 %v83, %v358
    %360 = vmatpush1.msra.mxu0 %v359
    %361 = vmatprep.subr.mxu0 0.0
    %v362 = vand.u32 %v82, 4294901760
    %v363 = vsub.f32 %v82, %v362
    %364 = vmatpush1.msra.mxu0 %v363
    %365 = vmatprep.subr.mxu0 0.0
    %v366 = vand.u32 %v81, 4294901760
    %v367 = vsub.f32 %v81, %v366
    %368 = vmatpush1.msra.mxu0 %v367
    %369 = vmatprep.subr.mxu0 0.0
    %v370 = vand.u32 %v80, 4294901760
    %v371 = vsub.f32 %v80, %v370
    %372 = vmatpush1.msra.mxu0 %v371
    %373 = vmatprep.subr.mxu0 0.0
    %v374 = vand.u32 %v79, 4294901760
    %v375 = vsub.f32 %v79, %v374
    %376 = vmatpush1.msra.mxu0 %v375
    %377 = vmatprep.subr.mxu0 0.0
    %v378 = vand.u32 %v78, 4294901760
    %v379 = vsub.f32 %v78, %v378
    %380 = vmatpush1.msra.mxu0 %v379
    %381 = vmatprep.subr.mxu0 0.0
    %v382 = vand.u32 %v77, 4294901760
    %v383 = vsub.f32 %v77, %v382
    %384 = vmatpush1.msra.mxu0 %v383
    %385 = vmatprep.subr.mxu0 0.0
    %v386 = vand.u32 %v76, 4294901760
    %v387 = vsub.f32 %v76, %v386
    %388 = vmatpush1.msra.mxu0 %v387
    %389 = vmatprep.subr.mxu0 0.0
    %v390 = vand.u32 %v75, 4294901760
    %v391 = vsub.f32 %v75, %v390
    %392 = vmatpush1.msra.mxu0 %v391
    %393 = vmatprep.subr.mxu0 0.0
    %v394 = vand.u32 %v74, 4294901760
    %v395 = vsub.f32 %v74, %v394
    %396 = vmatpush1.msra.mxu0 %v395
    %397 = vmatprep.subr.mxu0 0.0
    %v398 = vand.u32 %v73, 4294901760
    %v399 = vsub.f32 %v73, %v398
    %400 = vmatpush1.msra.mxu0 %v399
    %401 = vmatprep.subr.mxu0 0.0
    %v402 = vand.u32 %v72, 4294901760
    %v403 = vsub.f32 %v72, %v402
    %404 = vmatpush1.msra.mxu0 %v403
    %405 = vmatprep.subr.mxu0 0.0
    %v406 = vand.u32 %v71, 4294901760
    %v407 = vsub.f32 %v71, %v406
    %408 = vmatpush1.msra.mxu0 %v407
    %409 = vmatprep.subr.mxu0 0.0
    %v410 = vand.u32 %v70, 4294901760
    %v411 = vsub.f32 %v70, %v410
    %412 = vmatpush1.msra.mxu0 %v411
    %413 = vmatprep.subr.mxu0 0.0
    %414 = vmatpush2.msra.mxu0 0.0
    %415 = vmatprep.subr.mxu0 0.0
    %416 = vmatpush2.msra.mxu0 0.0
    %417 = vmatprep.subr.mxu0 0.0
    %418 = vmatpush2.msra.mxu0 0.0
    %419 = vmatprep.subr.mxu0 0.0
    %420 = vmatpush2.msra.mxu0 0.0
    %421 = vmatprep.subr.mxu0 0.0
    %422 = vmatpush2.msra.mxu0 0.0
    %423 = vmatprep.subr.mxu0 0.0
    %424 = vmatpush2.msra.mxu0 0.0
    %425 = vmatprep.subr.mxu0 0.0
    %426 = vmatpush2.msra.mxu0 0.0
    %427 = vmatprep.subr.mxu0 0.0
    %428 = vmatpush2.msra.mxu0 0.0
    %429 = vmatprep.subr.mxu0 0.0
    %430 = vmatpush2.msra.mxu0 0.0
    %431 = vmatprep.subr.mxu0 0.0
    %432 = vmatpush2.msra.mxu0 0.0
    %433 = vmatprep.subr.mxu0 0.0
    %434 = vmatpush2.msra.mxu0 0.0
    %435 = vmatprep.subr.mxu0 0.0
    %436 = vmatpush2.msra.mxu0 0.0
    %437 = vmatprep.subr.mxu0 0.0
    %438 = vmatpush2.msra.mxu0 0.0
    %439 = vmatprep.subr.mxu0 0.0
    %440 = vmatpush2.msra.mxu0 0.0
    %441 = vmatprep.subr.mxu0 0.0
    %442 = vmatpush2.msra.mxu0 0.0
    %443 = vmatprep.subr.mxu0 0.0
    %444 = vmatpush2.msra.mxu0 0.0
    %445 = vmatprep.mubr.f32.mxu0 0.0
    %v446 = vand.u32 %v106, 4294901760
    %v447 = vsub.f32 %v106, %v446
    %448 = vmatmul.mubr.f32.gmra.mxu0 %v447
    %v449 = vpop.f32.mrf.mxu0
    %v450 = vadd.f32 %v346, %v449
    %v451 = vpop.f32.mrf.mxu0
    %452 = vdwg.mxu0
    %453 = vmatprep.subr.mxu0 0.0
    %v454 = vand.u32 %v85, 4294901760
    %455 = vmatpush1.msra.mxu0 %v454
    %456 = vmatprep.subr.mxu0 0.0
    %v457 = vand.u32 %v84, 4294901760
    %458 = vmatpush1.msra.mxu0 %v457
    %459 = vmatprep.subr.mxu0 0.0
    %v460 = vand.u32 %v83, 4294901760
    %461 = vmatpush1.msra.mxu0 %v460
    %462 = vmatprep.subr.mxu0 0.0
    %v463 = vand.u32 %v82, 4294901760
    %464 = vmatpush1.msra.mxu0 %v463
    %465 = vmatprep.subr.mxu0 0.0
    %v466 = vand.u32 %v81, 4294901760
    %467 = vmatpush1.msra.mxu0 %v466
    %468 = vmatprep.subr.mxu0 0.0
    %v469 = vand.u32 %v80, 4294901760
    %470 = vmatpush1.msra.mxu0 %v469
    %471 = vmatprep.subr.mxu0 0.0
    %v472 = vand.u32 %v79, 4294901760
    %473 = vmatpush1.msra.mxu0 %v472
    %474 = vmatprep.subr.mxu0 0.0
    %v475 = vand.u32 %v78, 4294901760
    %476 = vmatpush1.msra.mxu0 %v475
    %477 = vmatprep.subr.mxu0 0.0
    %v478 = vand.u32 %v77, 4294901760
    %479 = vmatpush1.msra.mxu0 %v478
    %480 = vmatprep.subr.mxu0 0.0
    %v481 = vand.u32 %v76, 4294901760
    %482 = vmatpush1.msra.mxu0 %v481
    %483 = vmatprep.subr.mxu0 0.0
    %v484 = vand.u32 %v75, 4294901760
    %485 = vmatpush1.msra.mxu0 %v484
    %486 = vmatprep.subr.mxu0 0.0
    %v487 = vand.u32 %v74, 4294901760
    %488 = vmatpush1.msra.mxu0 %v487
    %489 = vmatprep.subr.mxu0 0.0
    %v490 = vand.u32 %v73, 4294901760
    %491 = vmatpush1.msra.mxu0 %v490
    %492 = vmatprep.subr.mxu0 0.0
    %v493 = vand.u32 %v72, 4294901760
    %494 = vmatpush1.msra.mxu0 %v493
    %495 = vmatprep.subr.mxu0 0.0
    %v496 = vand.u32 %v71, 4294901760
    %497 = vmatpush1.msra.mxu0 %v496
    %498 = vmatprep.subr.mxu0 0.0
    %v499 = vand.u32 %v70, 4294901760
    %500 = vmatpush1.msra.mxu0 %v499
    %501 = vmatprep.subr.mxu0 0.0
    %502 = vmatpush2.msra.mxu0 0.0
    %503 = vmatprep.subr.mxu0 0.0
    %504 = vmatpush2.msra.mxu0 0.0
    %505 = vmatprep.subr.mxu0 0.0
    %506 = vmatpush2.msra.mxu0 0.0
    %507 = vmatprep.subr.mxu0 0.0
    %508 = vmatpush2.msra.mxu0 0.0
    %509 = vmatprep.subr.mxu0 0.0
    %510 = vmatpush2.msra.mxu0 0.0
    %511 = vmatprep.subr.mxu0 0.0
    %512 = vmatpush2.msra.mxu0 0.0
    %513 = vmatprep.subr.mxu0 0.0
    %514 = vmatpush2.msra.mxu0 0.0
    %515 = vmatprep.subr.mxu0 0.0
    %516 = vmatpush2.msra.mxu0 0.0
    %517 = vmatprep.subr.mxu0 0.0
    %518 = vmatpush2.msra.mxu0 0.0
    %519 = vmatprep.subr.mxu0 0.0
    %520 = vmatpush2.msra.mxu0 0.0
    %521 = vmatprep.subr.mxu0 0.0
    %522 = vmatpush2.msra.mxu0 0.0
    %523 = vmatprep.subr.mxu0 0.0
    %524 = vmatpush2.msra.mxu0 0.0
    %525 = vmatprep.subr.mxu0 0.0
    %526 = vmatpush2.msra.mxu0 0.0
    %527 = vmatprep.subr.mxu0 0.0
    %528 = vmatpush2.msra.mxu0 0.0
    %529 = vmatprep.subr.mxu0 0.0
    %530 = vmatpush2.msra.mxu0 0.0
    %531 = vmatprep.subr.mxu0 0.0
    %532 = vmatpush2.msra.mxu0 0.0
    %533 = vmatprep.mubr.f32.mxu0 0.0
    %v534 = vand.u32 %v106, 4294901760
    %v535 = vsub.f32 %v106, %v534
    %v536 = vand.u32 %v535, 4294901760
    %537 = vmatmul.mubr.f32.gmra.mxu0 %v536
    %v538 = vpop.f32.mrf.mxu0
    %v539 = vadd.f32 %v450, %v538
    %v540 = vpop.f32.mrf.mxu0
    %541 = vdwg.mxu0
    %542 = vmatprep.subr.mxu0 0.0
    %v543 = vand.u32 %v85, 4294901760
    %v544 = vsub.f32 %v85, %v543
    %v545 = vand.u32 %v544, 4294901760
    %546 = vmatpush1.msra.mxu0 %v545
    %547 = vmatprep.subr.mxu0 0.0
    %v548 = vand.u32 %v84, 4294901760
    %v549 = vsub.f32 %v84, %v548
    %v550 = vand.u32 %v549, 4294901760
    %551 = vmatpush1.msra.mxu0 %v550
    %552 = vmatprep.subr.mxu0 0.0
    %v553 = vand.u32 %v83, 4294901760
    %v554 = vsub.f32 %v83, %v553
    %v555 = vand.u32 %v554, 4294901760
    %556 = vmatpush1.msra.mxu0 %v555
    %557 = vmatprep.subr.mxu0 0.0
    %v558 = vand.u32 %v82, 4294901760
    %v559 = vsub.f32 %v82, %v558
    %v560 = vand.u32 %v559, 4294901760
    %561 = vmatpush1.msra.mxu0 %v560
    %562 = vmatprep.subr.mxu0 0.0
    %v563 = vand.u32 %v81, 4294901760
    %v564 = vsub.f32 %v81, %v563
    %v565 = vand.u32 %v564, 4294901760
    %566 = vmatpush1.msra.mxu0 %v565
    %567 = vmatprep.subr.mxu0 0.0
    %v568 = vand.u32 %v80, 4294901760
    %v569 = vsub.f32 %v80, %v568
    %v570 = vand.u32 %v569, 4294901760
    %571 = vmatpush1.msra.mxu0 %v570
    %572 = vmatprep.subr.mxu0 0.0
    %v573 = vand.u32 %v79, 4294901760
    %v574 = vsub.f32 %v79, %v573
    %v575 = vand.u32 %v574, 4294901760
    %576 = vmatpush1.msra.mxu0 %v575
    %577 = vmatprep.subr.mxu0 0.0
    %v578 = vand.u32 %v78, 4294901760
    %v579 = vsub.f32 %v78, %v578
    %v580 = vand.u32 %v579, 4294901760
    %581 = vmatpush1.msra.mxu0 %v580
    %582 = vmatprep.subr.mxu0 0.0
    %v583 = vand.u32 %v77, 4294901760
    %v584 = vsub.f32 %v77, %v583
    %v585 = vand.u32 %v584, 4294901760
    %586 = vmatpush1.msra.mxu0 %v585
    %587 = vmatprep.subr.mxu0 0.0
    %v588 = vand.u32 %v76, 4294901760
    %v589 = vsub.f32 %v76, %v588
    %v590 = vand.u32 %v589, 4294901760
    %591 = vmatpush1.msra.mxu0 %v590
    %592 = vmatprep.subr.mxu0 0.0
    %v593 = vand.u32 %v75, 4294901760
    %v594 = vsub.f32 %v75, %v593
    %v595 = vand.u32 %v594, 4294901760
    %596 = vmatpush1.msra.mxu0 %v595
    %597 = vmatprep.subr.mxu0 0.0
    %v598 = vand.u32 %v74, 4294901760
    %v599 = vsub.f32 %v74, %v598
    %v600 = vand.u32 %v599, 4294901760
    %601 = vmatpush1.msra.mxu0 %v600
    %602 = vmatprep.subr.mxu0 0.0
    %v603 = vand.u32 %v73, 4294901760
    %v604 = vsub.f32 %v73, %v603
    %v605 = vand.u32 %v604, 4294901760
    %606 = vmatpush1.msra.mxu0 %v605
    %607 = vmatprep.subr.mxu0 0.0
    %v608 = vand.u32 %v72, 4294901760
    %v609 = vsub.f32 %v72, %v608
    %v610 = vand.u32 %v609, 4294901760
    %611 = vmatpush1.msra.mxu0 %v610
    %612 = vmatprep.subr.mxu0 0.0
    %v613 = vand.u32 %v71, 4294901760
    %v614 = vsub.f32 %v71, %v613
    %v615 = vand.u32 %v614, 4294901760
    %616 = vmatpush1.msra.mxu0 %v615
    %617 = vmatprep.subr.mxu0 0.0
    %v618 = vand.u32 %v70, 4294901760
    %v619 = vsub.f32 %v70, %v618
    %v620 = vand.u32 %v619, 4294901760
    %621 = vmatpush1.msra.mxu0 %v620
    %622 = vmatprep.subr.mxu0 0.0
    %623 = vmatpush2.msra.mxu0 0.0
    %624 = vmatprep.subr.mxu0 0.0
    %625 = vmatpush2.msra.mxu0 0.0
    %626 = vmatprep.subr.mxu0 0.0
    %627 = vmatpush2.msra.mxu0 0.0
    %628 = vmatprep.subr.mxu0 0.0
    %629 = vmatpush2.msra.mxu0 0.0
    %630 = vmatprep.subr.mxu0 0.0
    %631 = vmatpush2.msra.mxu0 0.0
    %632 = vmatprep.subr.mxu0 0.0
    %633 = vmatpush2.msra.mxu0 0.0
    %634 = vmatprep.subr.mxu0 0.0
    %635 = vmatpush2.msra.mxu0 0.0
    %636 = vmatprep.subr.mxu0 0.0
    %637 = vmatpush2.msra.mxu0 0.0
    %638 = vmatprep.subr.mxu0 0.0
    %639 = vmatpush2.msra.mxu0 0.0
    %640 = vmatprep.subr.mxu0 0.0
    %641 = vmatpush2.msra.mxu0 0.0
    %642 = vmatprep.subr.mxu0 0.0
    %643 = vmatpush2.msra.mxu0 0.0
    %644 = vmatprep.subr.mxu0 0.0
    %645 = vmatpush2.msra.mxu0 0.0
    %646 = vmatprep.subr.mxu0 0.0
    %647 = vmatpush2.msra.mxu0 0.0
    %648 = vmatprep.subr.mxu0 0.0
    %649 = vmatpush2.msra.mxu0 0.0
    %650 = vmatprep.subr.mxu0 0.0
    %651 = vmatpush2.msra.mxu0 0.0
    %652 = vmatprep.subr.mxu0 0.0
    %653 = vmatpush2.msra.mxu0 0.0
    %654 = vmatprep.mubr.f32.mxu0 0.0
    %v655 = vand.u32 %v106, 4294901760
    %656 = vmatmul.mubr.f32.gmra.mxu0 %v655
    %v657 = vpop.f32.mrf.mxu0
    %v658 = vadd.f32 %v539, %v657
    %v659 = vpop.f32.mrf.mxu0
    %660 = vdwg.mxu0
    %661 = vmatprep.subr.mxu0 0.0
    %v662 = vand.u32 %v85, 4294901760
    %663 = vmatpush1.msra.mxu0 %v662
    %664 = vmatprep.subr.mxu0 0.0
    %v665 = vand.u32 %v84, 4294901760
    %666 = vmatpush1.msra.mxu0 %v665
    %667 = vmatprep.subr.mxu0 0.0
    %v668 = vand.u32 %v83, 4294901760
    %669 = vmatpush1.msra.mxu0 %v668
    %670 = vmatprep.subr.mxu0 0.0
    %v671 = vand.u32 %v82, 4294901760
    %672 = vmatpush1.msra.mxu0 %v671
    %673 = vmatprep.subr.mxu0 0.0
    %v674 = vand.u32 %v81, 4294901760
    %675 = vmatpush1.msra.mxu0 %v674
    %676 = vmatprep.subr.mxu0 0.0
    %v677 = vand.u32 %v80, 4294901760
    %678 = vmatpush1.msra.mxu0 %v677
    %679 = vmatprep.subr.mxu0 0.0
    %v680 = vand.u32 %v79, 4294901760
    %681 = vmatpush1.msra.mxu0 %v680
    %682 = vmatprep.subr.mxu0 0.0
    %v683 = vand.u32 %v78, 4294901760
    %684 = vmatpush1.msra.mxu0 %v683
    %685 = vmatprep.subr.mxu0 0.0
    %v686 = vand.u32 %v77, 4294901760
    %687 = vmatpush1.msra.mxu0 %v686
    %688 = vmatprep.subr.mxu0 0.0
    %v689 = vand.u32 %v76, 4294901760
    %690 = vmatpush1.msra.mxu0 %v689
    %691 = vmatprep.subr.mxu0 0.0
    %v692 = vand.u32 %v75, 4294901760
    %693 = vmatpush1.msra.mxu0 %v692
    %694 = vmatprep.subr.mxu0 0.0
    %v695 = vand.u32 %v74, 4294901760
    %696 = vmatpush1.msra.mxu0 %v695
    %697 = vmatprep.subr.mxu0 0.0
    %v698 = vand.u32 %v73, 4294901760
    %699 = vmatpush1.msra.mxu0 %v698
    %700 = vmatprep.subr.mxu0 0.0
    %v701 = vand.u32 %v72, 4294901760
    %702 = vmatpush1.msra.mxu0 %v701
    %703 = vmatprep.subr.mxu0 0.0
    %v704 = vand.u32 %v71, 4294901760
    %705 = vmatpush1.msra.mxu0 %v704
    %706 = vmatprep.subr.mxu0 0.0
    %v707 = vand.u32 %v70, 4294901760
    %708 = vmatpush1.msra.mxu0 %v707
    %709 = vmatprep.subr.mxu0 0.0
    %710 = vmatpush2.msra.mxu0 0.0
    %711 = vmatprep.subr.mxu0 0.0
    %712 = vmatpush2.msra.mxu0 0.0
    %713 = vmatprep.subr.mxu0 0.0
    %714 = vmatpush2.msra.mxu0 0.0
    %715 = vmatprep.subr.mxu0 0.0
    %716 = vmatpush2.msra.mxu0 0.0
    %717 = vmatprep.subr.mxu0 0.0
    %718 = vmatpush2.msra.mxu0 0.0
    %719 = vmatprep.subr.mxu0 0.0
    %720 = vmatpush2.msra.mxu0 0.0
    %721 = vmatprep.subr.mxu0 0.0
    %722 = vmatpush2.msra.mxu0 0.0
    %723 = vmatprep.subr.mxu0 0.0
    %724 = vmatpush2.msra.mxu0 0.0
    %725 = vmatprep.subr.mxu0 0.0
    %726 = vmatpush2.msra.mxu0 0.0
    %727 = vmatprep.subr.mxu0 0.0
    %728 = vmatpush2.msra.mxu0 0.0
    %729 = vmatprep.subr.mxu0 0.0
    %730 = vmatpush2.msra.mxu0 0.0
    %731 = vmatprep.subr.mxu0 0.0
    %732 = vmatpush2.msra.mxu0 0.0
    %733 = vmatprep.subr.mxu0 0.0
    %734 = vmatpush2.msra.mxu0 0.0
    %735 = vmatprep.subr.mxu0 0.0
    %736 = vmatpush2.msra.mxu0 0.0
    %737 = vmatprep.subr.mxu0 0.0
    %738 = vmatpush2.msra.mxu0 0.0
    %739 = vmatprep.subr.mxu0 0.0
    %740 = vmatpush2.msra.mxu0 0.0
    %741 = vmatprep.mubr.f32.mxu0 0.0
    %v742 = vand.u32 %v106, 4294901760
    %743 = vmatmul.mubr.f32.gmra.mxu0 %v742
    %v744 = vpop.f32.mrf.mxu0
    %v745 = vadd.f32 %v658, %v744
    %v746 = vpop.f32.mrf.mxu0
    %747 = vdwg.mxu0
    %v748 = vrcp.pop %v745
    %v749 = vmul.f32 %v745, %v748
    %v750 = vsub.f32 2.0, %v749
    %v751 = vmul.f32 %v748, %v750
    %v752 = vmul.f32 %v106, %v751
    %v753 = vlog2.pop %v745
    %v754 = vmul.f32 %v753, 0.6931472
    %v755 = vadd.f32 %v103, %v754
    %v756 = vsub.f32 %v755, %v69
    %v757 = vmul.f32 %v752, %v756
    %758 = vmatprep.subr.mxu0 0.0
    %v759 = vand.u32 %v85, 4294901760
    %760 = vmatpush1.msra.mxu0 %v759
    %761 = vmatprep.subr.mxu0 0.0
    %v762 = vand.u32 %v84, 4294901760
    %763 = vmatpush1.msra.mxu0 %v762
    %764 = vmatprep.subr.mxu0 0.0
    %v765 = vand.u32 %v83, 4294901760
    %766 = vmatpush1.msra.mxu0 %v765
    %767 = vmatprep.subr.mxu0 0.0
    %v768 = vand.u32 %v82, 4294901760
    %769 = vmatpush1.msra.mxu0 %v768
    %770 = vmatprep.subr.mxu0 0.0
    %v771 = vand.u32 %v81, 4294901760
    %772 = vmatpush1.msra.mxu0 %v771
    %773 = vmatprep.subr.mxu0 0.0
    %v774 = vand.u32 %v80, 4294901760
    %775 = vmatpush1.msra.mxu0 %v774
    %776 = vmatprep.subr.mxu0 0.0
    %v777 = vand.u32 %v79, 4294901760
    %778 = vmatpush1.msra.mxu0 %v777
    %779 = vmatprep.subr.mxu0 0.0
    %v780 = vand.u32 %v78, 4294901760
    %781 = vmatpush1.msra.mxu0 %v780
    %782 = vmatprep.subr.mxu0 0.0
    %v783 = vand.u32 %v77, 4294901760
    %784 = vmatpush1.msra.mxu0 %v783
    %785 = vmatprep.subr.mxu0 0.0
    %v786 = vand.u32 %v76, 4294901760
    %787 = vmatpush1.msra.mxu0 %v786
    %788 = vmatprep.subr.mxu0 0.0
    %v789 = vand.u32 %v75, 4294901760
    %790 = vmatpush1.msra.mxu0 %v789
    %791 = vmatprep.subr.mxu0 0.0
    %v792 = vand.u32 %v74, 4294901760
    %793 = vmatpush1.msra.mxu0 %v792
    %794 = vmatprep.subr.mxu0 0.0
    %v795 = vand.u32 %v73, 4294901760
    %796 = vmatpush1.msra.mxu0 %v795
    %797 = vmatprep.subr.mxu0 0.0
    %v798 = vand.u32 %v72, 4294901760
    %799 = vmatpush1.msra.mxu0 %v798
    %800 = vmatprep.subr.mxu0 0.0
    %v801 = vand.u32 %v71, 4294901760
    %802 = vmatpush1.msra.mxu0 %v801
    %803 = vmatprep.subr.mxu0 0.0
    %v804 = vand.u32 %v70, 4294901760
    %805 = vmatpush1.msra.mxu0 %v804
    %806 = vmatprep.subr.mxu0 0.0
    %807 = vmatpush2.msra.mxu0 0.0
    %808 = vmatprep.subr.mxu0 0.0
    %809 = vmatpush2.msra.mxu0 0.0
    %810 = vmatprep.subr.mxu0 0.0
    %811 = vmatpush2.msra.mxu0 0.0
    %812 = vmatprep.subr.mxu0 0.0
    %813 = vmatpush2.msra.mxu0 0.0
    %814 = vmatprep.subr.mxu0 0.0
    %815 = vmatpush2.msra.mxu0 0.0
    %816 = vmatprep.subr.mxu0 0.0
    %817 = vmatpush2.msra.mxu0 0.0
    %818 = vmatprep.subr.mxu0 0.0
    %819 = vmatpush2.msra.mxu0 0.0
    %820 = vmatprep.subr.mxu0 0.0
    %821 = vmatpush2.msra.mxu0 0.0
    %822 = vmatprep.subr.mxu0 0.0
    %823 = vmatpush2.msra.mxu0 0.0
    %824 = vmatprep.subr.mxu0 0.0
    %825 = vmatpush2.msra.mxu0 0.0
    %826 = vmatprep.subr.mxu0 0.0
    %827 = vmatpush2.msra.mxu0 0.0
    %828 = vmatprep.subr.mxu0 0.0
    %829 = vmatpush2.msra.mxu0 0.0
    %830 = vmatprep.subr.mxu0 0.0
    %831 = vmatpush2.msra.mxu0 0.0
    %832 = vmatprep.subr.mxu0 0.0
    %833 = vmatpush2.msra.mxu0 0.0
    %834 = vmatprep.subr.mxu0 0.0
    %835 = vmatpush2.msra.mxu0 0.0
    %836 = vmatprep.subr.mxu0 0.0
    %837 = vmatpush2.msra.mxu0 0.0
    %838 = vmatprep.mubr.f32.mxu0 0.0
    %v839 = vand.u32 %v757, 4294901760
    %v840 = vsub.f32 %v757, %v839
    %v841 = vand.u32 %v840, 4294901760
    %v842 = vsub.f32 %v840, %v841
    %v843 = vand.u32 %v842, 4294901760
    %844 = vmatmul.mubr.f32.gmra.mxu0 %v843
    %v845 = vpop.f32.mrf.mxu0
    %v846 = vadd.f32 0.0, %v845
    %v847 = vpop.f32.mrf.mxu0
    %848 = vdwg.mxu0
    %849 = vmatprep.subr.mxu0 0.0
    %v850 = vand.u32 %v85, 4294901760
    %v851 = vsub.f32 %v85, %v850
    %v852 = vand.u32 %v851, 4294901760
    %v853 = vsub.f32 %v851, %v852
    %v854 = vand.u32 %v853, 4294901760
    %855 = vmatpush1.msra.mxu0 %v854
    %856 = vmatprep.subr.mxu0 0.0
    %v857 = vand.u32 %v84, 4294901760
    %v858 = vsub.f32 %v84, %v857
    %v859 = vand.u32 %v858, 4294901760
    %v860 = vsub.f32 %v858, %v859
    %v861 = vand.u32 %v860, 4294901760
    %862 = vmatpush1.msra.mxu0 %v861
    %863 = vmatprep.subr.mxu0 0.0
    %v864 = vand.u32 %v83, 4294901760
    %v865 = vsub.f32 %v83, %v864
    %v866 = vand.u32 %v865, 4294901760
    %v867 = vsub.f32 %v865, %v866
    %v868 = vand.u32 %v867, 4294901760
    %869 = vmatpush1.msra.mxu0 %v868
    %870 = vmatprep.subr.mxu0 0.0
    %v871 = vand.u32 %v82, 4294901760
    %v872 = vsub.f32 %v82, %v871
    %v873 = vand.u32 %v872, 4294901760
    %v874 = vsub.f32 %v872, %v873
    %v875 = vand.u32 %v874, 4294901760
    %876 = vmatpush1.msra.mxu0 %v875
    %877 = vmatprep.subr.mxu0 0.0
    %v878 = vand.u32 %v81, 4294901760
    %v879 = vsub.f32 %v81, %v878
    %v880 = vand.u32 %v879, 4294901760
    %v881 = vsub.f32 %v879, %v880
    %v882 = vand.u32 %v881, 4294901760
    %883 = vmatpush1.msra.mxu0 %v882
    %884 = vmatprep.subr.mxu0 0.0
    %v885 = vand.u32 %v80, 4294901760
    %v886 = vsub.f32 %v80, %v885
    %v887 = vand.u32 %v886, 4294901760
    %v888 = vsub.f32 %v886, %v887
    %v889 = vand.u32 %v888, 4294901760
    %890 = vmatpush1.msra.mxu0 %v889
    %891 = vmatprep.subr.mxu0 0.0
    %v892 = vand.u32 %v79, 4294901760
    %v893 = vsub.f32 %v79, %v892
    %v894 = vand.u32 %v893, 4294901760
    %v895 = vsub.f32 %v893, %v894
    %v896 = vand.u32 %v895, 4294901760
    %897 = vmatpush1.msra.mxu0 %v896
    %898 = vmatprep.subr.mxu0 0.0
    %v899 = vand.u32 %v78, 4294901760
    %v900 = vsub.f32 %v78, %v899
    %v901 = vand.u32 %v900, 4294901760
    %v902 = vsub.f32 %v900, %v901
    %v903 = vand.u32 %v902, 4294901760
    %904 = vmatpush1.msra.mxu0 %v903
    %905 = vmatprep.subr.mxu0 0.0
    %v906 = vand.u32 %v77, 4294901760
    %v907 = vsub.f32 %v77, %v906
    %v908 = vand.u32 %v907, 4294901760
    %v909 = vsub.f32 %v907, %v908
    %v910 = vand.u32 %v909, 4294901760
    %911 = vmatpush1.msra.mxu0 %v910
    %912 = vmatprep.subr.mxu0 0.0
    %v913 = vand.u32 %v76, 4294901760
    %v914 = vsub.f32 %v76, %v913
    %v915 = vand.u32 %v914, 4294901760
    %v916 = vsub.f32 %v914, %v915
    %v917 = vand.u32 %v916, 4294901760
    %918 = vmatpush1.msra.mxu0 %v917
    %919 = vmatprep.subr.mxu0 0.0
    %v920 = vand.u32 %v75, 4294901760
    %v921 = vsub.f32 %v75, %v920
    %v922 = vand.u32 %v921, 4294901760
    %v923 = vsub.f32 %v921, %v922
    %v924 = vand.u32 %v923, 4294901760
    %925 = vmatpush1.msra.mxu0 %v924
    %926 = vmatprep.subr.mxu0 0.0
    %v927 = vand.u32 %v74, 4294901760
    %v928 = vsub.f32 %v74, %v927
    %v929 = vand.u32 %v928, 4294901760
    %v930 = vsub.f32 %v928, %v929
    %v931 = vand.u32 %v930, 4294901760
    %932 = vmatpush1.msra.mxu0 %v931
    %933 = vmatprep.subr.mxu0 0.0
    %v934 = vand.u32 %v73, 4294901760
    %v935 = vsub.f32 %v73, %v934
    %v936 = vand.u32 %v935, 4294901760
    %v937 = vsub.f32 %v935, %v936
    %v938 = vand.u32 %v937, 4294901760
    %939 = vmatpush1.msra.mxu0 %v938
    %940 = vmatprep.subr.mxu0 0.0
    %v941 = vand.u32 %v72, 4294901760
    %v942 = vsub.f32 %v72, %v941
    %v943 = vand.u32 %v942, 4294901760
    %v944 = vsub.f32 %v942, %v943
    %v945 = vand.u32 %v944, 4294901760
    %946 = vmatpush1.msra.mxu0 %v945
    %947 = vmatprep.subr.mxu0 0.0
    %v948 = vand.u32 %v71, 4294901760
    %v949 = vsub.f32 %v71, %v948
    %v950 = vand.u32 %v949, 4294901760
    %v951 = vsub.f32 %v949, %v950
    %v952 = vand.u32 %v951, 4294901760
    %953 = vmatpush1.msra.mxu0 %v952
    %954 = vmatprep.subr.mxu0 0.0
    %v955 = vand.u32 %v70, 4294901760
    %v956 = vsub.f32 %v70, %v955
    %v957 = vand.u32 %v956, 4294901760
    %v958 = vsub.f32 %v956, %v957
    %v959 = vand.u32 %v958, 4294901760
    %960 = vmatpush1.msra.mxu0 %v959
    %961 = vmatprep.subr.mxu0 0.0
    %962 = vmatpush2.msra.mxu0 0.0
    %963 = vmatprep.subr.mxu0 0.0
    %964 = vmatpush2.msra.mxu0 0.0
    %965 = vmatprep.subr.mxu0 0.0
    %966 = vmatpush2.msra.mxu0 0.0
    %967 = vmatprep.subr.mxu0 0.0
    %968 = vmatpush2.msra.mxu0 0.0
    %969 = vmatprep.subr.mxu0 0.0
    %970 = vmatpush2.msra.mxu0 0.0
    %971 = vmatprep.subr.mxu0 0.0
    %972 = vmatpush2.msra.mxu0 0.0
    %973 = vmatprep.subr.mxu0 0.0
    %974 = vmatpush2.msra.mxu0 0.0
    %975 = vmatprep.subr.mxu0 0.0
    %976 = vmatpush2.msra.mxu0 0.0
    %977 = vmatprep.subr.mxu0 0.0
    %978 = vmatpush2.msra.mxu0 0.0
    %979 = vmatprep.subr.mxu0 0.0
    %980 = vmatpush2.msra.mxu0 0.0
    %981 = vmatprep.subr.mxu0 0.0
    %982 = vmatpush2.msra.mxu0 0.0
    %983 = vmatprep.subr.mxu0 0.0
    %984 = vmatpush2.msra.mxu0 0.0
    %985 = vmatprep.subr.mxu0 0.0
    %986 = vmatpush2.msra.mxu0 0.0
    %987 = vmatprep.subr.mxu0 0.0
    %988 = vmatpush2.msra.mxu0 0.0
    %989 = vmatprep.subr.mxu0 0.0
    %990 = vmatpush2.msra.mxu0 0.0
    %991 = vmatprep.subr.mxu0 0.0
    %992 = vmatpush2.msra.mxu0 0.0
    %993 = vmatprep.mubr.f32.mxu0 0.0
    %v994 = vand.u32 %v757, 4294901760
    %995 = vmatmul.mubr.f32.gmra.mxu0 %v994
    %v996 = vpop.f32.mrf.mxu0
    %v997 = vadd.f32 %v846, %v996
    %v998 = vpop.f32.mrf.mxu0
    %999 = vdwg.mxu0
    %1000 = vmatprep.subr.mxu0 0.0
    %v1001 = vand.u32 %v85, 4294901760
    %v1002 = vsub.f32 %v85, %v1001
    %1003 = vmatpush1.msra.mxu0 %v1002
    %1004 = vmatprep.subr.mxu0 0.0
    %v1005 = vand.u32 %v84, 4294901760
    %v1006 = vsub.f32 %v84, %v1005
    %1007 = vmatpush1.msra.mxu0 %v1006
    %1008 = vmatprep.subr.mxu0 0.0
    %v1009 = vand.u32 %v83, 4294901760
    %v1010 = vsub.f32 %v83, %v1009
    %1011 = vmatpush1.msra.mxu0 %v1010
    %1012 = vmatprep.subr.mxu0 0.0
    %v1013 = vand.u32 %v82, 4294901760
    %v1014 = vsub.f32 %v82, %v1013
    %1015 = vmatpush1.msra.mxu0 %v1014
    %1016 = vmatprep.subr.mxu0 0.0
    %v1017 = vand.u32 %v81, 4294901760
    %v1018 = vsub.f32 %v81, %v1017
    %1019 = vmatpush1.msra.mxu0 %v1018
    %1020 = vmatprep.subr.mxu0 0.0
    %v1021 = vand.u32 %v80, 4294901760
    %v1022 = vsub.f32 %v80, %v1021
    %1023 = vmatpush1.msra.mxu0 %v1022
    %1024 = vmatprep.subr.mxu0 0.0
    %v1025 = vand.u32 %v79, 4294901760
    %v1026 = vsub.f32 %v79, %v1025
    %1027 = vmatpush1.msra.mxu0 %v1026
    %1028 = vmatprep.subr.mxu0 0.0
    %v1029 = vand.u32 %v78, 4294901760
    %v1030 = vsub.f32 %v78, %v1029
    %1031 = vmatpush1.msra.mxu0 %v1030
    %1032 = vmatprep.subr.mxu0 0.0
    %v1033 = vand.u32 %v77, 4294901760
    %v1034 = vsub.f32 %v77, %v1033
    %1035 = vmatpush1.msra.mxu0 %v1034
    %1036 = vmatprep.subr.mxu0 0.0
    %v1037 = vand.u32 %v76, 4294901760
    %v1038 = vsub.f32 %v76, %v1037
    %1039 = vmatpush1.msra.mxu0 %v1038
    %1040 = vmatprep.subr.mxu0 0.0
    %v1041 = vand.u32 %v75, 4294901760
    %v1042 = vsub.f32 %v75, %v1041
    %1043 = vmatpush1.msra.mxu0 %v1042
    %1044 = vmatprep.subr.mxu0 0.0
    %v1045 = vand.u32 %v74, 4294901760
    %v1046 = vsub.f32 %v74, %v1045
    %1047 = vmatpush1.msra.mxu0 %v1046
    %1048 = vmatprep.subr.mxu0 0.0
    %v1049 = vand.u32 %v73, 4294901760
    %v1050 = vsub.f32 %v73, %v1049
    %1051 = vmatpush1.msra.mxu0 %v1050
    %1052 = vmatprep.subr.mxu0 0.0
    %v1053 = vand.u32 %v72, 4294901760
    %v1054 = vsub.f32 %v72, %v1053
    %1055 = vmatpush1.msra.mxu0 %v1054
    %1056 = vmatprep.subr.mxu0 0.0
    %v1057 = vand.u32 %v71, 4294901760
    %v1058 = vsub.f32 %v71, %v1057
    %1059 = vmatpush1.msra.mxu0 %v1058
    %1060 = vmatprep.subr.mxu0 0.0
    %v1061 = vand.u32 %v70, 4294901760
    %v1062 = vsub.f32 %v70, %v1061
    %1063 = vmatpush1.msra.mxu0 %v1062
    %1064 = vmatprep.subr.mxu0 0.0
    %1065 = vmatpush2.msra.mxu0 0.0
    %1066 = vmatprep.subr.mxu0 0.0
    %1067 = vmatpush2.msra.mxu0 0.0
    %1068 = vmatprep.subr.mxu0 0.0
    %1069 = vmatpush2.msra.mxu0 0.0
    %1070 = vmatprep.subr.mxu0 0.0
    %1071 = vmatpush2.msra.mxu0 0.0
    %1072 = vmatprep.subr.mxu0 0.0
    %1073 = vmatpush2.msra.mxu0 0.0
    %1074 = vmatprep.subr.mxu0 0.0
    %1075 = vmatpush2.msra.mxu0 0.0
    %1076 = vmatprep.subr.mxu0 0.0
    %1077 = vmatpush2.msra.mxu0 0.0
    %1078 = vmatprep.subr.mxu0 0.0
    %1079 = vmatpush2.msra.mxu0 0.0
    %1080 = vmatprep.subr.mxu0 0.0
    %1081 = vmatpush2.msra.mxu0 0.0
    %1082 = vmatprep.subr.mxu0 0.0
    %1083 = vmatpush2.msra.mxu0 0.0
    %1084 = vmatprep.subr.mxu0 0.0
    %1085 = vmatpush2.msra.mxu0 0.0
    %1086 = vmatprep.subr.mxu0 0.0
    %1087 = vmatpush2.msra.mxu0 0.0
    %1088 = vmatprep.subr.mxu0 0.0
    %1089 = vmatpush2.msra.mxu0 0.0
    %1090 = vmatprep.subr.mxu0 0.0
    %1091 = vmatpush2.msra.mxu0 0.0
    %1092 = vmatprep.subr.mxu0 0.0
    %1093 = vmatpush2.msra.mxu0 0.0
    %1094 = vmatprep.subr.mxu0 0.0
    %1095 = vmatpush2.msra.mxu0 0.0
    %1096 = vmatprep.mubr.f32.mxu0 0.0
    %v1097 = vand.u32 %v757, 4294901760
    %v1098 = vsub.f32 %v757, %v1097
    %1099 = vmatmul.mubr.f32.gmra.mxu0 %v1098
    %v1100 = vpop.f32.mrf.mxu0
    %v1101 = vadd.f32 %v997, %v1100
    %v1102 = vpop.f32.mrf.mxu0
    %1103 = vdwg.mxu0
    %1104 = vmatprep.subr.mxu0 0.0
    %v1105 = vand.u32 %v85, 4294901760
    %1106 = vmatpush1.msra.mxu0 %v1105
    %1107 = vmatprep.subr.mxu0 0.0
    %v1108 = vand.u32 %v84, 4294901760
    %1109 = vmatpush1.msra.mxu0 %v1108
    %1110 = vmatprep.subr.mxu0 0.0
    %v1111 = vand.u32 %v83, 4294901760
    %1112 = vmatpush1.msra.mxu0 %v1111
    %1113 = vmatprep.subr.mxu0 0.0
    %v1114 = vand.u32 %v82, 4294901760
    %1115 = vmatpush1.msra.mxu0 %v1114
    %1116 = vmatprep.subr.mxu0 0.0
    %v1117 = vand.u32 %v81, 4294901760
    %1118 = vmatpush1.msra.mxu0 %v1117
    %1119 = vmatprep.subr.mxu0 0.0
    %v1120 = vand.u32 %v80, 4294901760
    %1121 = vmatpush1.msra.mxu0 %v1120
    %1122 = vmatprep.subr.mxu0 0.0
    %v1123 = vand.u32 %v79, 4294901760
    %1124 = vmatpush1.msra.mxu0 %v1123
    %1125 = vmatprep.subr.mxu0 0.0
    %v1126 = vand.u32 %v78, 4294901760
    %1127 = vmatpush1.msra.mxu0 %v1126
    %1128 = vmatprep.subr.mxu0 0.0
    %v1129 = vand.u32 %v77, 4294901760
    %1130 = vmatpush1.msra.mxu0 %v1129
    %1131 = vmatprep.subr.mxu0 0.0
    %v1132 = vand.u32 %v76, 4294901760
    %1133 = vmatpush1.msra.mxu0 %v1132
    %1134 = vmatprep.subr.mxu0 0.0
    %v1135 = vand.u32 %v75, 4294901760
    %1136 = vmatpush1.msra.mxu0 %v1135
    %1137 = vmatprep.subr.mxu0 0.0
    %v1138 = vand.u32 %v74, 4294901760
    %1139 = vmatpush1.msra.mxu0 %v1138
    %1140 = vmatprep.subr.mxu0 0.0
    %v1141 = vand.u32 %v73, 4294901760
    %1142 = vmatpush1.msra.mxu0 %v1141
    %1143 = vmatprep.subr.mxu0 0.0
    %v1144 = vand.u32 %v72, 4294901760
    %1145 = vmatpush1.msra.mxu0 %v1144
    %1146 = vmatprep.subr.mxu0 0.0
    %v1147 = vand.u32 %v71, 4294901760
    %1148 = vmatpush1.msra.mxu0 %v1147
    %1149 = vmatprep.subr.mxu0 0.0
    %v1150 = vand.u32 %v70, 4294901760
    %1151 = vmatpush1.msra.mxu0 %v1150
    %1152 = vmatprep.subr.mxu0 0.0
    %1153 = vmatpush2.msra.mxu0 0.0
    %1154 = vmatprep.subr.mxu0 0.0
    %1155 = vmatpush2.msra.mxu0 0.0
    %1156 = vmatprep.subr.mxu0 0.0
    %1157 = vmatpush2.msra.mxu0 0.0
    %1158 = vmatprep.subr.mxu0 0.0
    %1159 = vmatpush2.msra.mxu0 0.0
    %1160 = vmatprep.subr.mxu0 0.0
    %1161 = vmatpush2.msra.mxu0 0.0
    %1162 = vmatprep.subr.mxu0 0.0
    %1163 = vmatpush2.msra.mxu0 0.0
    %1164 = vmatprep.subr.mxu0 0.0
    %1165 = vmatpush2.msra.mxu0 0.0
    %1166 = vmatprep.subr.mxu0 0.0
    %1167 = vmatpush2.msra.mxu0 0.0
    %1168 = vmatprep.subr.mxu0 0.0
    %1169 = vmatpush2.msra.mxu0 0.0
    %1170 = vmatprep.subr.mxu0 0.0
    %1171 = vmatpush2.msra.mxu0 0.0
    %1172 = vmatprep.subr.mxu0 0.0
    %1173 = vmatpush2.msra.mxu0 0.0
    %1174 = vmatprep.subr.mxu0 0.0
    %1175 = vmatpush2.msra.mxu0 0.0
    %1176 = vmatprep.subr.mxu0 0.0
    %1177 = vmatpush2.msra.mxu0 0.0
    %1178 = vmatprep.subr.mxu0 0.0
    %1179 = vmatpush2.msra.mxu0 0.0
    %1180 = vmatprep.subr.mxu0 0.0
    %1181 = vmatpush2.msra.mxu0 0.0
    %1182 = vmatprep.subr.mxu0 0.0
    %1183 = vmatpush2.msra.mxu0 0.0
    %1184 = vmatprep.mubr.f32.mxu0 0.0
    %v1185 = vand.u32 %v757, 4294901760
    %v1186 = vsub.f32 %v757, %v1185
    %v1187 = vand.u32 %v1186, 4294901760
    %1188 = vmatmul.mubr.f32.gmra.mxu0 %v1187
    %v1189 = vpop.f32.mrf.mxu0
    %v1190 = vadd.f32 %v1101, %v1189
    %v1191 = vpop.f32.mrf.mxu0
    %1192 = vdwg.mxu0
    %1193 = vmatprep.subr.mxu0 0.0
    %v1194 = vand.u32 %v85, 4294901760
    %v1195 = vsub.f32 %v85, %v1194
    %v1196 = vand.u32 %v1195, 4294901760
    %1197 = vmatpush1.msra.mxu0 %v1196
    %1198 = vmatprep.subr.mxu0 0.0
    %v1199 = vand.u32 %v84, 4294901760
    %v1200 = vsub.f32 %v84, %v1199
    %v1201 = vand.u32 %v1200, 4294901760
    %1202 = vmatpush1.msra.mxu0 %v1201
    %1203 = vmatprep.subr.mxu0 0.0
    %v1204 = vand.u32 %v83, 4294901760
    %v1205 = vsub.f32 %v83, %v1204
    %v1206 = vand.u32 %v1205, 4294901760
    %1207 = vmatpush1.msra.mxu0 %v1206
    %1208 = vmatprep.subr.mxu0 0.0
    %v1209 = vand.u32 %v82, 4294901760
    %v1210 = vsub.f32 %v82, %v1209
    %v1211 = vand.u32 %v1210, 4294901760
    %1212 = vmatpush1.msra.mxu0 %v1211
    %1213 = vmatprep.subr.mxu0 0.0
    %v1214 = vand.u32 %v81, 4294901760
    %v1215 = vsub.f32 %v81, %v1214
    %v1216 = vand.u32 %v1215, 4294901760
    %1217 = vmatpush1.msra.mxu0 %v1216
    %1218 = vmatprep.subr.mxu0 0.0
    %v1219 = vand.u32 %v80, 4294901760
    %v1220 = vsub.f32 %v80, %v1219
    %v1221 = vand.u32 %v1220, 4294901760
    %1222 = vmatpush1.msra.mxu0 %v1221
    %1223 = vmatprep.subr.mxu0 0.0
    %v1224 = vand.u32 %v79, 4294901760
    %v1225 = vsub.f32 %v79, %v1224
    %v1226 = vand.u32 %v1225, 4294901760
    %1227 = vmatpush1.msra.mxu0 %v1226
    %1228 = vmatprep.subr.mxu0 0.0
    %v1229 = vand.u32 %v78, 4294901760
    %v1230 = vsub.f32 %v78, %v1229
    %v1231 = vand.u32 %v1230, 4294901760
    %1232 = vmatpush1.msra.mxu0 %v1231
    %1233 = vmatprep.subr.mxu0 0.0
    %v1234 = vand.u32 %v77, 4294901760
    %v1235 = vsub.f32 %v77, %v1234
    %v1236 = vand.u32 %v1235, 4294901760
    %1237 = vmatpush1.msra.mxu0 %v1236
    %1238 = vmatprep.subr.mxu0 0.0
    %v1239 = vand.u32 %v76, 4294901760
    %v1240 = vsub.f32 %v76, %v1239
    %v1241 = vand.u32 %v1240, 4294901760
    %1242 = vmatpush1.msra.mxu0 %v1241
    %1243 = vmatprep.subr.mxu0 0.0
    %v1244 = vand.u32 %v75, 4294901760
    %v1245 = vsub.f32 %v75, %v1244
    %v1246 = vand.u32 %v1245, 4294901760
    %1247 = vmatpush1.msra.mxu0 %v1246
    %1248 = vmatprep.subr.mxu0 0.0
    %v1249 = vand.u32 %v74, 4294901760
    %v1250 = vsub.f32 %v74, %v1249
    %v1251 = vand.u32 %v1250, 4294901760
    %1252 = vmatpush1.msra.mxu0 %v1251
    %1253 = vmatprep.subr.mxu0 0.0
    %v1254 = vand.u32 %v73, 4294901760
    %v1255 = vsub.f32 %v73, %v1254
    %v1256 = vand.u32 %v1255, 4294901760
    %1257 = vmatpush1.msra.mxu0 %v1256
    %1258 = vmatprep.subr.mxu0 0.0
    %v1259 = vand.u32 %v72, 4294901760
    %v1260 = vsub.f32 %v72, %v1259
    %v1261 = vand.u32 %v1260, 4294901760
    %1262 = vmatpush1.msra.mxu0 %v1261
    %1263 = vmatprep.subr.mxu0 0.0
    %v1264 = vand.u32 %v71, 4294901760
    %v1265 = vsub.f32 %v71, %v1264
    %v1266 = vand.u32 %v1265, 4294901760
    %1267 = vmatpush1.msra.mxu0 %v1266
    %1268 = vmatprep.subr.mxu0 0.0
    %v1269 = vand.u32 %v70, 4294901760
    %v1270 = vsub.f32 %v70, %v1269
    %v1271 = vand.u32 %v1270, 4294901760
    %1272 = vmatpush1.msra.mxu0 %v1271
    %1273 = vmatprep.subr.mxu0 0.0
    %1274 = vmatpush2.msra.mxu0 0.0
    %1275 = vmatprep.subr.mxu0 0.0
    %1276 = vmatpush2.msra.mxu0 0.0
    %1277 = vmatprep.subr.mxu0 0.0
    %1278 = vmatpush2.msra.mxu0 0.0
    %1279 = vmatprep.subr.mxu0 0.0
    %1280 = vmatpush2.msra.mxu0 0.0
    %1281 = vmatprep.subr.mxu0 0.0
    %1282 = vmatpush2.msra.mxu0 0.0
    %1283 = vmatprep.subr.mxu0 0.0
    %1284 = vmatpush2.msra.mxu0 0.0
    %1285 = vmatprep.subr.mxu0 0.0
    %1286 = vmatpush2.msra.mxu0 0.0
    %1287 = vmatprep.subr.mxu0 0.0
    %1288 = vmatpush2.msra.mxu0 0.0
    %1289 = vmatprep.subr.mxu0 0.0
    %1290 = vmatpush2.msra.mxu0 0.0
    %1291 = vmatprep.subr.mxu0 0.0
    %1292 = vmatpush2.msra.mxu0 0.0
    %1293 = vmatprep.subr.mxu0 0.0
    %1294 = vmatpush2.msra.mxu0 0.0
    %1295 = vmatprep.subr.mxu0 0.0
    %1296 = vmatpush2.msra.mxu0 0.0
    %1297 = vmatprep.subr.mxu0 0.0
    %1298 = vmatpush2.msra.mxu0 0.0
    %1299 = vmatprep.subr.mxu0 0.0
    %1300 = vmatpush2.msra.mxu0 0.0
    %1301 = vmatprep.subr.mxu0 0.0
    %1302 = vmatpush2.msra.mxu0 0.0
    %1303 = vmatprep.subr.mxu0 0.0
    %1304 = vmatpush2.msra.mxu0 0.0
    %1305 = vmatprep.mubr.f32.mxu0 0.0
    %v1306 = vand.u32 %v757, 4294901760
    %1307 = vmatmul.mubr.f32.gmra.mxu0 %v1306
    %v1308 = vpop.f32.mrf.mxu0
    %v1309 = vadd.f32 %v1190, %v1308
    %v1310 = vpop.f32.mrf.mxu0
    %1311 = vdwg.mxu0
    %1312 = vmatprep.subr.mxu0 0.0
    %v1313 = vand.u32 %v85, 4294901760
    %1314 = vmatpush1.msra.mxu0 %v1313
    %1315 = vmatprep.subr.mxu0 0.0
    %v1316 = vand.u32 %v84, 4294901760
    %1317 = vmatpush1.msra.mxu0 %v1316
    %1318 = vmatprep.subr.mxu0 0.0
    %v1319 = vand.u32 %v83, 4294901760
    %1320 = vmatpush1.msra.mxu0 %v1319
    %1321 = vmatprep.subr.mxu0 0.0
    %v1322 = vand.u32 %v82, 4294901760
    %1323 = vmatpush1.msra.mxu0 %v1322
    %1324 = vmatprep.subr.mxu0 0.0
    %v1325 = vand.u32 %v81, 4294901760
    %1326 = vmatpush1.msra.mxu0 %v1325
    %1327 = vmatprep.subr.mxu0 0.0
    %v1328 = vand.u32 %v80, 4294901760
    %1329 = vmatpush1.msra.mxu0 %v1328
    %1330 = vmatprep.subr.mxu0 0.0
    %v1331 = vand.u32 %v79, 4294901760
    %1332 = vmatpush1.msra.mxu0 %v1331
    %1333 = vmatprep.subr.mxu0 0.0
    %v1334 = vand.u32 %v78, 4294901760
    %1335 = vmatpush1.msra.mxu0 %v1334
    %1336 = vmatprep.subr.mxu0 0.0
    %v1337 = vand.u32 %v77, 4294901760
    %1338 = vmatpush1.msra.mxu0 %v1337
    %1339 = vmatprep.subr.mxu0 0.0
    %v1340 = vand.u32 %v76, 4294901760
    %1341 = vmatpush1.msra.mxu0 %v1340
    %1342 = vmatprep.subr.mxu0 0.0
    %v1343 = vand.u32 %v75, 4294901760
    %1344 = vmatpush1.msra.mxu0 %v1343
    %1345 = vmatprep.subr.mxu0 0.0
    %v1346 = vand.u32 %v74, 4294901760
    %1347 = vmatpush1.msra.mxu0 %v1346
    %1348 = vmatprep.subr.mxu0 0.0
    %v1349 = vand.u32 %v73, 4294901760
    %1350 = vmatpush1.msra.mxu0 %v1349
    %1351 = vmatprep.subr.mxu0 0.0
    %v1352 = vand.u32 %v72, 4294901760
    %1353 = vmatpush1.msra.mxu0 %v1352
    %1354 = vmatprep.subr.mxu0 0.0
    %v1355 = vand.u32 %v71, 4294901760
    %1356 = vmatpush1.msra.mxu0 %v1355
    %1357 = vmatprep.subr.mxu0 0.0
    %v1358 = vand.u32 %v70, 4294901760
    %1359 = vmatpush1.msra.mxu0 %v1358
    %1360 = vmatprep.subr.mxu0 0.0
    %1361 = vmatpush2.msra.mxu0 0.0
    %1362 = vmatprep.subr.mxu0 0.0
    %1363 = vmatpush2.msra.mxu0 0.0
    %1364 = vmatprep.subr.mxu0 0.0
    %1365 = vmatpush2.msra.mxu0 0.0
    %1366 = vmatprep.subr.mxu0 0.0
    %1367 = vmatpush2.msra.mxu0 0.0
    %1368 = vmatprep.subr.mxu0 0.0
    %1369 = vmatpush2.msra.mxu0 0.0
    %1370 = vmatprep.subr.mxu0 0.0
    %1371 = vmatpush2.msra.mxu0 0.0
    %1372 = vmatprep.subr.mxu0 0.0
    %1373 = vmatpush2.msra.mxu0 0.0
    %1374 = vmatprep.subr.mxu0 0.0
    %1375 = vmatpush2.msra.mxu0 0.0
    %1376 = vmatprep.subr.mxu0 0.0
    %1377 = vmatpush2.msra.mxu0 0.0
    %1378 = vmatprep.subr.mxu0 0.0
    %1379 = vmatpush2.msra.mxu0 0.0
    %1380 = vmatprep.subr.mxu0 0.0
    %1381 = vmatpush2.msra.mxu0 0.0
    %1382 = vmatprep.subr.mxu0 0.0
    %1383 = vmatpush2.msra.mxu0 0.0
    %1384 = vmatprep.subr.mxu0 0.0
    %1385 = vmatpush2.msra.mxu0 0.0
    %1386 = vmatprep.subr.mxu0 0.0
    %1387 = vmatpush2.msra.mxu0 0.0
    %1388 = vmatprep.subr.mxu0 0.0
    %1389 = vmatpush2.msra.mxu0 0.0
    %1390 = vmatprep.subr.mxu0 0.0
    %1391 = vmatpush2.msra.mxu0 0.0
    %1392 = vmatprep.mubr.f32.mxu0 0.0
    %v1393 = vand.u32 %v757, 4294901760
    %1394 = vmatmul.mubr.f32.gmra.mxu0 %v1393
    %v1395 = vpop.f32.mrf.mxu0
    %v1396 = vadd.f32 %v1309, %v1395
    %v1397 = vpop.f32.mrf.mxu0
    %1398 = vdwg.mxu0
    %v1399 = vmul.f32 %v1396, 0.9617967
    %v1400 = vsub.f32 %v1399, 1.0
    %v1401 = vld [vmem:[#allocation5] sm:$0x1]
    %v1402 = vld [vmem:[#allocation5 + $0x2] sm:$0x1]
    %v1403 = vld [vmem:[#allocation5 + $0x4] sm:$0x1]
    %v1404 = vlaneseq
    %v1405 = vshrl.u32 %v1404, 7
    %v1406 = vsub.s32 0, %v1405
    %v1407 = vrot.slane %v1401, %v1406
    %v1408 = vmul.f32 %v1400, %v1407
    %v1409 = vlaneseq
    %v1410 = vshrl.u32 %v1409, 7
    %v1411 = vsub.s32 0, %v1410
    %v1412 = vrot.slane %v1402, %v1411
    %v1413 = vadd.f32 %v1408, %v1412
    %v1414 = vmax.f32 %v1413, 0.0
    %v1415 = vlaneseq
    %v1416 = vshrl.u32 %v1415, 7
    %v1417 = vsub.s32 0, %v1416
    %v1418 = vrot.slane %v1403, %v1417
    %v1419 = vmul.f32 %v1414, %v1418
    %v1420 = vld [vmem:[#allocation5 + $0x1] sm:$0x1]
    %v1421 = vld [vmem:[#allocation5 + $0x3] sm:$0x1]
    %v1422 = vld [vmem:[#allocation5 + $0x5] sm:$0x1]
    %v1423 = vlaneseq
    %v1424 = vshrl.u32 %v1423, 7
    %v1425 = vsub.s32 0, %v1424
    %v1426 = vrot.slane %v1420, %v1425
    %v1427 = vmul.f32 %v1400, %v1426
    %v1428 = vlaneseq
    %v1429 = vshrl.u32 %v1428, 7
    %v1430 = vsub.s32 0, %v1429
    %v1431 = vrot.slane %v1421, %v1430
    %v1432 = vadd.f32 %v1427, %v1431
    %v1433 = vmax.f32 %v1432, 0.0
    %v1434 = vlaneseq
    %v1435 = vshrl.u32 %v1434, 7
    %v1436 = vsub.s32 0, %v1435
    %v1437 = vrot.slane %v1422, %v1436
    %v1438 = vmul.f32 %v1433, %v1437
    %v1439 = vadd.f32 %v1419, %v1438
    %v1440 = vld [vmem:[#allocation5 + $0x6] sm:$0x1]
    %v1441 = vld [vmem:[#allocation5 + $0x7] sm:$0x1]
    %v1442 = vlaneseq
    %v1443 = vshrl.u32 %v1442, 7
    %v1444 = vsub.s32 0, %v1443
    %v1445 = vrot.slane %v1440, %v1444
    %1446 = vmatprep.subr.mxu0 0.0
    %v1447 = vand.u32 %v85, 4294901760
    %1448 = vmatpush1.msra.mxu0 %v1447
    %1449 = vmatprep.subr.mxu0 0.0
    %v1450 = vand.u32 %v84, 4294901760
    %1451 = vmatpush1.msra.mxu0 %v1450
    %1452 = vmatprep.subr.mxu0 0.0
    %v1453 = vand.u32 %v83, 4294901760
    %1454 = vmatpush1.msra.mxu0 %v1453
    %1455 = vmatprep.subr.mxu0 0.0
    %v1456 = vand.u32 %v82, 4294901760
    %1457 = vmatpush1.msra.mxu0 %v1456
    %1458 = vmatprep.subr.mxu0 0.0
    %v1459 = vand.u32 %v81, 4294901760
    %1460 = vmatpush1.msra.mxu0 %v1459
    %1461 = vmatprep.subr.mxu0 0.0
    %v1462 = vand.u32 %v80, 4294901760
    %1463 = vmatpush1.msra.mxu0 %v1462
    %1464 = vmatprep.subr.mxu0 0.0
    %v1465 = vand.u32 %v79, 4294901760
    %1466 = vmatpush1.msra.mxu0 %v1465
    %1467 = vmatprep.subr.mxu0 0.0
    %v1468 = vand.u32 %v78, 4294901760
    %1469 = vmatpush1.msra.mxu0 %v1468
    %1470 = vmatprep.subr.mxu0 0.0
    %v1471 = vand.u32 %v77, 4294901760
    %1472 = vmatpush1.msra.mxu0 %v1471
    %1473 = vmatprep.subr.mxu0 0.0
    %v1474 = vand.u32 %v76, 4294901760
    %1475 = vmatpush1.msra.mxu0 %v1474
    %1476 = vmatprep.subr.mxu0 0.0
    %v1477 = vand.u32 %v75, 4294901760
    %1478 = vmatpush1.msra.mxu0 %v1477
    %1479 = vmatprep.subr.mxu0 0.0
    %v1480 = vand.u32 %v74, 4294901760
    %1481 = vmatpush1.msra.mxu0 %v1480
    %1482 = vmatprep.subr.mxu0 0.0
    %v1483 = vand.u32 %v73, 4294901760
    %1484 = vmatpush1.msra.mxu0 %v1483
    %1485 = vmatprep.subr.mxu0 0.0
    %v1486 = vand.u32 %v72, 4294901760
    %1487 = vmatpush1.msra.mxu0 %v1486
    %1488 = vmatprep.subr.mxu0 0.0
    %v1489 = vand.u32 %v71, 4294901760
    %1490 = vmatpush1.msra.mxu0 %v1489
    %1491 = vmatprep.subr.mxu0 0.0
    %v1492 = vand.u32 %v70, 4294901760
    %1493 = vmatpush1.msra.mxu0 %v1492
    %1494 = vmatprep.subr.mxu0 0.0
    %1495 = vmatpush2.msra.mxu0 0.0
    %1496 = vmatprep.subr.mxu0 0.0
    %1497 = vmatpush2.msra.mxu0 0.0
    %1498 = vmatprep.subr.mxu0 0.0
    %1499 = vmatpush2.msra.mxu0 0.0
    %1500 = vmatprep.subr.mxu0 0.0
    %1501 = vmatpush2.msra.mxu0 0.0
    %1502 = vmatprep.subr.mxu0 0.0
    %1503 = vmatpush2.msra.mxu0 0.0
    %1504 = vmatprep.subr.mxu0 0.0
    %1505 = vmatpush2.msra.mxu0 0.0
    %1506 = vmatprep.subr.mxu0 0.0
    %1507 = vmatpush2.msra.mxu0 0.0
    %1508 = vmatprep.subr.mxu0 0.0
    %1509 = vmatpush2.msra.mxu0 0.0
    %1510 = vmatprep.subr.mxu0 0.0
    %1511 = vmatpush2.msra.mxu0 0.0
    %1512 = vmatprep.subr.mxu0 0.0
    %1513 = vmatpush2.msra.mxu0 0.0
    %1514 = vmatprep.subr.mxu0 0.0
    %1515 = vmatpush2.msra.mxu0 0.0
    %1516 = vmatprep.subr.mxu0 0.0
    %1517 = vmatpush2.msra.mxu0 0.0
    %1518 = vmatprep.subr.mxu0 0.0
    %1519 = vmatpush2.msra.mxu0 0.0
    %1520 = vmatprep.subr.mxu0 0.0
    %1521 = vmatpush2.msra.mxu0 0.0
    %1522 = vmatprep.subr.mxu0 0.0
    %1523 = vmatpush2.msra.mxu0 0.0
    %1524 = vmatprep.subr.mxu0 0.0
    %1525 = vmatpush2.msra.mxu0 0.0
    %1526 = vmatprep.mubr.f32.mxu0 0.0
    %v1527 = vand.u32 %v1439, 4294901760
    %v1528 = vsub.f32 %v1439, %v1527
    %v1529 = vand.u32 %v1528, 4294901760
    %v1530 = vsub.f32 %v1528, %v1529
    %v1531 = vand.u32 %v1530, 4294901760
    %1532 = vmatmul.mubr.f32.gmra.mxu0 %v1531
    %v1533 = vpop.f32.mrf.mxu0
    %v1534 = vadd.f32 %v1445, %v1533
    %v1535 = vpop.f32.mrf.mxu0
    %1536 = vdwg.mxu0
    %1537 = vmatprep.subr.mxu0 0.0
    %v1538 = vand.u32 %v85, 4294901760
    %v1539 = vsub.f32 %v85, %v1538
    %v1540 = vand.u32 %v1539, 4294901760
    %v1541 = vsub.f32 %v1539, %v1540
    %v1542 = vand.u32 %v1541, 4294901760
    %1543 = vmatpush1.msra.mxu0 %v1542
    %1544 = vmatprep.subr.mxu0 0.0
    %v1545 = vand.u32 %v84, 4294901760
    %v1546 = vsub.f32 %v84, %v1545
    %v1547 = vand.u32 %v1546, 4294901760
    %v1548 = vsub.f32 %v1546, %v1547
    %v1549 = vand.u32 %v1548, 4294901760
    %1550 = vmatpush1.msra.mxu0 %v1549
    %1551 = vmatprep.subr.mxu0 0.0
    %v1552 = vand.u32 %v83, 4294901760
    %v1553 = vsub.f32 %v83, %v1552
    %v1554 = vand.u32 %v1553, 4294901760
    %v1555 = vsub.f32 %v1553, %v1554
    %v1556 = vand.u32 %v1555, 4294901760
    %1557 = vmatpush1.msra.mxu0 %v1556
    %1558 = vmatprep.subr.mxu0 0.0
    %v1559 = vand.u32 %v82, 4294901760
    %v1560 = vsub.f32 %v82, %v1559
    %v1561 = vand.u32 %v1560, 4294901760
    %v1562 = vsub.f32 %v1560, %v1561
    %v1563 = vand.u32 %v1562, 4294901760
    %1564 = vmatpush1.msra.mxu0 %v1563
    %1565 = vmatprep.subr.mxu0 0.0
    %v1566 = vand.u32 %v81, 4294901760
    %v1567 = vsub.f32 %v81, %v1566
    %v1568 = vand.u32 %v1567, 4294901760
    %v1569 = vsub.f32 %v1567, %v1568
    %v1570 = vand.u32 %v1569, 4294901760
    %1571 = vmatpush1.msra.mxu0 %v1570
    %1572 = vmatprep.subr.mxu0 0.0
    %v1573 = vand.u32 %v80, 4294901760
    %v1574 = vsub.f32 %v80, %v1573
    %v1575 = vand.u32 %v1574, 4294901760
    %v1576 = vsub.f32 %v1574, %v1575
    %v1577 = vand.u32 %v1576, 4294901760
    %1578 = vmatpush1.msra.mxu0 %v1577
    %1579 = vmatprep.subr.mxu0 0.0
    %v1580 = vand.u32 %v79, 4294901760
    %v1581 = vsub.f32 %v79, %v1580
    %v1582 = vand.u32 %v1581, 4294901760
    %v1583 = vsub.f32 %v1581, %v1582
    %v1584 = vand.u32 %v1583, 4294901760
    %1585 = vmatpush1.msra.mxu0 %v1584
    %1586 = vmatprep.subr.mxu0 0.0
    %v1587 = vand.u32 %v78, 4294901760
    %v1588 = vsub.f32 %v78, %v1587
    %v1589 = vand.u32 %v1588, 4294901760
    %v1590 = vsub.f32 %v1588, %v1589
    %v1591 = vand.u32 %v1590, 4294901760
    %1592 = vmatpush1.msra.mxu0 %v1591
    %1593 = vmatprep.subr.mxu0 0.0
    %v1594 = vand.u32 %v77, 4294901760
    %v1595 = vsub.f32 %v77, %v1594
    %v1596 = vand.u32 %v1595, 4294901760
    %v1597 = vsub.f32 %v1595, %v1596
    %v1598 = vand.u32 %v1597, 4294901760
    %1599 = vmatpush1.msra.mxu0 %v1598
    %1600 = vmatprep.subr.mxu0 0.0
    %v1601 = vand.u32 %v76, 4294901760
    %v1602 = vsub.f32 %v76, %v1601
    %v1603 = vand.u32 %v1602, 4294901760
    %v1604 = vsub.f32 %v1602, %v1603
    %v1605 = vand.u32 %v1604, 4294901760
    %1606 = vmatpush1.msra.mxu0 %v1605
    %1607 = vmatprep.subr.mxu0 0.0
    %v1608 = vand.u32 %v75, 4294901760
    %v1609 = vsub.f32 %v75, %v1608
    %v1610 = vand.u32 %v1609, 4294901760
    %v1611 = vsub.f32 %v1609, %v1610
    %v1612 = vand.u32 %v1611, 4294901760
    %1613 = vmatpush1.msra.mxu0 %v1612
    %1614 = vmatprep.subr.mxu0 0.0
    %v1615 = vand.u32 %v74, 4294901760
    %v1616 = vsub.f32 %v74, %v1615
    %v1617 = vand.u32 %v1616, 4294901760
    %v1618 = vsub.f32 %v1616, %v1617
    %v1619 = vand.u32 %v1618, 4294901760
    %1620 = vmatpush1.msra.mxu0 %v1619
    %1621 = vmatprep.subr.mxu0 0.0
    %v1622 = vand.u32 %v73, 4294901760
    %v1623 = vsub.f32 %v73, %v1622
    %v1624 = vand.u32 %v1623, 4294901760
    %v1625 = vsub.f32 %v1623, %v1624
    %v1626 = vand.u32 %v1625, 4294901760
    %1627 = vmatpush1.msra.mxu0 %v1626
    %1628 = vmatprep.subr.mxu0 0.0
    %v1629 = vand.u32 %v72, 4294901760
    %v1630 = vsub.f32 %v72, %v1629
    %v1631 = vand.u32 %v1630, 4294901760
    %v1632 = vsub.f32 %v1630, %v1631
    %v1633 = vand.u32 %v1632, 4294901760
    %1634 = vmatpush1.msra.mxu0 %v1633
    %1635 = vmatprep.subr.mxu0 0.0
    %v1636 = vand.u32 %v71, 4294901760
    %v1637 = vsub.f32 %v71, %v1636
    %v1638 = vand.u32 %v1637, 4294901760
    %v1639 = vsub.f32 %v1637, %v1638
    %v1640 = vand.u32 %v1639, 4294901760
    %1641 = vmatpush1.msra.mxu0 %v1640
    %1642 = vmatprep.subr.mxu0 0.0
    %v1643 = vand.u32 %v70, 4294901760
    %v1644 = vsub.f32 %v70, %v1643
    %v1645 = vand.u32 %v1644, 4294901760
    %v1646 = vsub.f32 %v1644, %v1645
    %v1647 = vand.u32 %v1646, 4294901760
    %1648 = vmatpush1.msra.mxu0 %v1647
    %1649 = vmatprep.subr.mxu0 0.0
    %1650 = vmatpush2.msra.mxu0 0.0
    %1651 = vmatprep.subr.mxu0 0.0
    %1652 = vmatpush2.msra.mxu0 0.0
    %1653 = vmatprep.subr.mxu0 0.0
    %1654 = vmatpush2.msra.mxu0 0.0
    %1655 = vmatprep.subr.mxu0 0.0
    %1656 = vmatpush2.msra.mxu0 0.0
    %1657 = vmatprep.subr.mxu0 0.0
    %1658 = vmatpush2.msra.mxu0 0.0
    %1659 = vmatprep.subr.mxu0 0.0
    %1660 = vmatpush2.msra.mxu0 0.0
    %1661 = vmatprep.subr.mxu0 0.0
    %1662 = vmatpush2.msra.mxu0 0.0
    %1663 = vmatprep.subr.mxu0 0.0
    %1664 = vmatpush2.msra.mxu0 0.0
    %1665 = vmatprep.subr.mxu0 0.0
    %1666 = vmatpush2.msra.mxu0 0.0
    %1667 = vmatprep.subr.mxu0 0.0
    %1668 = vmatpush2.msra.mxu0 0.0
    %1669 = vmatprep.subr.mxu0 0.0
    %1670 = vmatpush2.msra.mxu0 0.0
    %1671 = vmatprep.subr.mxu0 0.0
    %1672 = vmatpush2.msra.mxu0 0.0
    %1673 = vmatprep.subr.mxu0 0.0
    %1674 = vmatpush2.msra.mxu0 0.0
    %1675 = vmatprep.subr.mxu0 0.0
    %1676 = vmatpush2.msra.mxu0 0.0
    %1677 = vmatprep.subr.mxu0 0.0
    %1678 = vmatpush2.msra.mxu0 0.0
    %1679 = vmatprep.subr.mxu0 0.0
    %1680 = vmatpush2.msra.mxu0 0.0
    %1681 = vmatprep.mubr.f32.mxu0 0.0
    %v1682 = vand.u32 %v1439, 4294901760
    %1683 = vmatmul.mubr.f32.gmra.mxu0 %v1682
    %v1684 = vpop.f32.mrf.mxu0
    %v1685 = vadd.f32 %v1534, %v1684
    %v1686 = vpop.f32.mrf.mxu0
    %1687 = vdwg.mxu0
    %1688 = vmatprep.subr.mxu0 0.0
    %v1689 = vand.u32 %v85, 4294901760
    %v1690 = vsub.f32 %v85, %v1689
    %1691 = vmatpush1.msra.mxu0 %v1690
    %1692 = vmatprep.subr.mxu0 0.0
    %v1693 = vand.u32 %v84, 4294901760
    %v1694 = vsub.f32 %v84, %v1693
    %1695 = vmatpush1.msra.mxu0 %v1694
    %1696 = vmatprep.subr.mxu0 0.0
    %v1697 = vand.u32 %v83, 4294901760
    %v1698 = vsub.f32 %v83, %v1697
    %1699 = vmatpush1.msra.mxu0 %v1698
    %1700 = vmatprep.subr.mxu0 0.0
    %v1701 = vand.u32 %v82, 4294901760
    %v1702 = vsub.f32 %v82, %v1701
    %1703 = vmatpush1.msra.mxu0 %v1702
    %1704 = vmatprep.subr.mxu0 0.0
    %v1705 = vand.u32 %v81, 4294901760
    %v1706 = vsub.f32 %v81, %v1705
    %1707 = vmatpush1.msra.mxu0 %v1706
    %1708 = vmatprep.subr.mxu0 0.0
    %v1709 = vand.u32 %v80, 4294901760
    %v1710 = vsub.f32 %v80, %v1709
    %1711 = vmatpush1.msra.mxu0 %v1710
    %1712 = vmatprep.subr.mxu0 0.0
    %v1713 = vand.u32 %v79, 4294901760
    %v1714 = vsub.f32 %v79, %v1713
    %1715 = vmatpush1.msra.mxu0 %v1714
    %1716 = vmatprep.subr.mxu0 0.0
    %v1717 = vand.u32 %v78, 4294901760
    %v1718 = vsub.f32 %v78, %v1717
    %1719 = vmatpush1.msra.mxu0 %v1718
    %1720 = vmatprep.subr.mxu0 0.0
    %v1721 = vand.u32 %v77, 4294901760
    %v1722 = vsub.f32 %v77, %v1721
    %1723 = vmatpush1.msra.mxu0 %v1722
    %1724 = vmatprep.subr.mxu0 0.0
    %v1725 = vand.u32 %v76, 4294901760
    %v1726 = vsub.f32 %v76, %v1725
    %1727 = vmatpush1.msra.mxu0 %v1726
    %1728 = vmatprep.subr.mxu0 0.0
    %v1729 = vand.u32 %v75, 4294901760
    %v1730 = vsub.f32 %v75, %v1729
    %1731 = vmatpush1.msra.mxu0 %v1730
    %1732 = vmatprep.subr.mxu0 0.0
    %v1733 = vand.u32 %v74, 4294901760
    %v1734 = vsub.f32 %v74, %v1733
    %1735 = vmatpush1.msra.mxu0 %v1734
    %1736 = vmatprep.subr.mxu0 0.0
    %v1737 = vand.u32 %v73, 4294901760
    %v1738 = vsub.f32 %v73, %v1737
    %1739 = vmatpush1.msra.mxu0 %v1738
    %1740 = vmatprep.subr.mxu0 0.0
    %v1741 = vand.u32 %v72, 4294901760
    %v1742 = vsub.f32 %v72, %v1741
    %1743 = vmatpush1.msra.mxu0 %v1742
    %1744 = vmatprep.subr.mxu0 0.0
    %v1745 = vand.u32 %v71, 4294901760
    %v1746 = vsub.f32 %v71, %v1745
    %1747 = vmatpush1.msra.mxu0 %v1746
    %1748 = vmatprep.subr.mxu0 0.0
    %v1749 = vand.u32 %v70, 4294901760
    %v1750 = vsub.f32 %v70, %v1749
    %1751 = vmatpush1.msra.mxu0 %v1750
    %1752 = vmatprep.subr.mxu0 0.0
    %1753 = vmatpush2.msra.mxu0 0.0
    %1754 = vmatprep.subr.mxu0 0.0
    %1755 = vmatpush2.msra.mxu0 0.0
    %1756 = vmatprep.subr.mxu0 0.0
    %1757 = vmatpush2.msra.mxu0 0.0
    %1758 = vmatprep.subr.mxu0 0.0
    %1759 = vmatpush2.msra.mxu0 0.0
    %1760 = vmatprep.subr.mxu0 0.0
    %1761 = vmatpush2.msra.mxu0 0.0
    %1762 = vmatprep.subr.mxu0 0.0
    %1763 = vmatpush2.msra.mxu0 0.0
    %1764 = vmatprep.subr.mxu0 0.0
    %1765 = vmatpush2.msra.mxu0 0.0
    %1766 = vmatprep.subr.mxu0 0.0
    %1767 = vmatpush2.msra.mxu0 0.0
    %1768 = vmatprep.subr.mxu0 0.0
    %1769 = vmatpush2.msra.mxu0 0.0
    %1770 = vmatprep.subr.mxu0 0.0
    %1771 = vmatpush2.msra.mxu0 0.0
    %1772 = vmatprep.subr.mxu0 0.0
    %1773 = vmatpush2.msra.mxu0 0.0
    %1774 = vmatprep.subr.mxu0 0.0
    %1775 = vmatpush2.msra.mxu0 0.0
    %1776 = vmatprep.subr.mxu0 0.0
    %1777 = vmatpush2.msra.mxu0 0.0
    %1778 = vmatprep.subr.mxu0 0.0
    %1779 = vmatpush2.msra.mxu0 0.0
    %1780 = vmatprep.subr.mxu0 0.0
    %1781 = vmatpush2.msra.mxu0 0.0
    %1782 = vmatprep.subr.mxu0 0.0
    %1783 = vmatpush2.msra.mxu0 0.0
    %1784 = vmatprep.mubr.f32.mxu0 0.0
    %v1785 = vand.u32 %v1439, 4294901760
    %v1786 = vsub.f32 %v1439, %v1785
    %1787 = vmatmul.mubr.f32.gmra.mxu0 %v1786
    %v1788 = vpop.f32.mrf.mxu0
    %v1789 = vadd.f32 %v1685, %v1788
    %v1790 = vpop.f32.mrf.mxu0
    %1791 = vdwg.mxu0
    %1792 = vmatprep.subr.mxu0 0.0
    %v1793 = vand.u32 %v85, 4294901760
    %1794 = vmatpush1.msra.mxu0 %v1793
    %1795 = vmatprep.subr.mxu0 0.0
    %v1796 = vand.u32 %v84, 4294901760
    %1797 = vmatpush1.msra.mxu0 %v1796
    %1798 = vmatprep.subr.mxu0 0.0
    %v1799 = vand.u32 %v83, 4294901760
    %1800 = vmatpush1.msra.mxu0 %v1799
    %1801 = vmatprep.subr.mxu0 0.0
    %v1802 = vand.u32 %v82, 4294901760
    %1803 = vmatpush1.msra.mxu0 %v1802
    %1804 = vmatprep.subr.mxu0 0.0
    %v1805 = vand.u32 %v81, 4294901760
    %1806 = vmatpush1.msra.mxu0 %v1805
    %1807 = vmatprep.subr.mxu0 0.0
    %v1808 = vand.u32 %v80, 4294901760
    %1809 = vmatpush1.msra.mxu0 %v1808
    %1810 = vmatprep.subr.mxu0 0.0
    %v1811 = vand.u32 %v79, 4294901760
    %1812 = vmatpush1.msra.mxu0 %v1811
    %1813 = vmatprep.subr.mxu0 0.0
    %v1814 = vand.u32 %v78, 4294901760
    %1815 = vmatpush1.msra.mxu0 %v1814
    %1816 = vmatprep.subr.mxu0 0.0
    %v1817 = vand.u32 %v77, 4294901760
    %1818 = vmatpush1.msra.mxu0 %v1817
    %1819 = vmatprep.subr.mxu0 0.0
    %v1820 = vand.u32 %v76, 4294901760
    %1821 = vmatpush1.msra.mxu0 %v1820
    %1822 = vmatprep.subr.mxu0 0.0
    %v1823 = vand.u32 %v75, 4294901760
    %1824 = vmatpush1.msra.mxu0 %v1823
    %1825 = vmatprep.subr.mxu0 0.0
    %v1826 = vand.u32 %v74, 4294901760
    %1827 = vmatpush1.msra.mxu0 %v1826
    %1828 = vmatprep.subr.mxu0 0.0
    %v1829 = vand.u32 %v73, 4294901760
    %1830 = vmatpush1.msra.mxu0 %v1829
    %1831 = vmatprep.subr.mxu0 0.0
    %v1832 = vand.u32 %v72, 4294901760
    %1833 = vmatpush1.msra.mxu0 %v1832
    %1834 = vmatprep.subr.mxu0 0.0
    %v1835 = vand.u32 %v71, 4294901760
    %1836 = vmatpush1.msra.mxu0 %v1835
    %1837 = vmatprep.subr.mxu0 0.0
    %v1838 = vand.u32 %v70, 4294901760
    %1839 = vmatpush1.msra.mxu0 %v1838
    %1840 = vmatprep.subr.mxu0 0.0
    %1841 = vmatpush2.msra.mxu0 0.0
    %1842 = vmatprep.subr.mxu0 0.0
    %1843 = vmatpush2.msra.mxu0 0.0
    %1844 = vmatprep.subr.mxu0 0.0
    %1845 = vmatpush2.msra.mxu0 0.0
    %1846 = vmatprep.subr.mxu0 0.0
    %1847 = vmatpush2.msra.mxu0 0.0
    %1848 = vmatprep.subr.mxu0 0.0
    %1849 = vmatpush2.msra.mxu0 0.0
    %1850 = vmatprep.subr.mxu0 0.0
    %1851 = vmatpush2.msra.mxu0 0.0
    %1852 = vmatprep.subr.mxu0 0.0
    %1853 = vmatpush2.msra.mxu0 0.0
    %1854 = vmatprep.subr.mxu0 0.0
    %1855 = vmatpush2.msra.mxu0 0.0
    %1856 = vmatprep.subr.mxu0 0.0
    %1857 = vmatpush2.msra.mxu0 0.0
    %1858 = vmatprep.subr.mxu0 0.0
    %1859 = vmatpush2.msra.mxu0 0.0
    %1860 = vmatprep.subr.mxu0 0.0
    %1861 = vmatpush2.msra.mxu0 0.0
    %1862 = vmatprep.subr.mxu0 0.0
    %1863 = vmatpush2.msra.mxu0 0.0
    %1864 = vmatprep.subr.mxu0 0.0
    %1865 = vmatpush2.msra.mxu0 0.0
    %1866 = vmatprep.subr.mxu0 0.0
    %1867 = vmatpush2.msra.mxu0 0.0
    %1868 = vmatprep.subr.mxu0 0.0
    %1869 = vmatpush2.msra.mxu0 0.0
    %1870 = vmatprep.subr.mxu0 0.0
    %1871 = vmatpush2.msra.mxu0 0.0
    %1872 = vmatprep.mubr.f32.mxu0 0.0
    %v1873 = vand.u32 %v1439, 4294901760
    %v1874 = vsub.f32 %v1439, %v1873
    %v1875 = vand.u32 %v1874, 4294901760
    %1876 = vmatmul.mubr.f32.gmra.mxu0 %v1875
    %v1877 = vpop.f32.mrf.mxu0
    %v1878 = vadd.f32 %v1789, %v1877
    %v1879 = vpop.f32.mrf.mxu0
    %1880 = vdwg.mxu0
    %1881 = vmatprep.subr.mxu0 0.0
    %v1882 = vand.u32 %v85, 4294901760
    %v1883 = vsub.f32 %v85, %v1882
    %v1884 = vand.u32 %v1883, 4294901760
    %1885 = vmatpush1.msra.mxu0 %v1884
    %1886 = vmatprep.subr.mxu0 0.0
    %v1887 = vand.u32 %v84, 4294901760
    %v1888 = vsub.f32 %v84, %v1887
    %v1889 = vand.u32 %v1888, 4294901760
    %1890 = vmatpush1.msra.mxu0 %v1889
    %1891 = vmatprep.subr.mxu0 0.0
    %v1892 = vand.u32 %v83, 4294901760
    %v1893 = vsub.f32 %v83, %v1892
    %v1894 = vand.u32 %v1893, 4294901760
    %1895 = vmatpush1.msra.mxu0 %v1894
    %1896 = vmatprep.subr.mxu0 0.0
    %v1897 = vand.u32 %v82, 4294901760
    %v1898 = vsub.f32 %v82, %v1897
    %v1899 = vand.u32 %v1898, 4294901760
    %1900 = vmatpush1.msra.mxu0 %v1899
    %1901 = vmatprep.subr.mxu0 0.0
    %v1902 = vand.u32 %v81, 4294901760
    %v1903 = vsub.f32 %v81, %v1902
    %v1904 = vand.u32 %v1903, 4294901760
    %1905 = vmatpush1.msra.mxu0 %v1904
    %1906 = vmatprep.subr.mxu0 0.0
    %v1907 = vand.u32 %v80, 4294901760
    %v1908 = vsub.f32 %v80, %v1907
    %v1909 = vand.u32 %v1908, 4294901760
    %1910 = vmatpush1.msra.mxu0 %v1909
    %1911 = vmatprep.subr.mxu0 0.0
    %v1912 = vand.u32 %v79, 4294901760
    %v1913 = vsub.f32 %v79, %v1912
    %v1914 = vand.u32 %v1913, 4294901760
    %1915 = vmatpush1.msra.mxu0 %v1914
    %1916 = vmatprep.subr.mxu0 0.0
    %v1917 = vand.u32 %v78, 4294901760
    %v1918 = vsub.f32 %v78, %v1917
    %v1919 = vand.u32 %v1918, 4294901760
    %1920 = vmatpush1.msra.mxu0 %v1919
    %1921 = vmatprep.subr.mxu0 0.0
    %v1922 = vand.u32 %v77, 4294901760
    %v1923 = vsub.f32 %v77, %v1922
    %v1924 = vand.u32 %v1923, 4294901760
    %1925 = vmatpush1.msra.mxu0 %v1924
    %1926 = vmatprep.subr.mxu0 0.0
    %v1927 = vand.u32 %v76, 4294901760
    %v1928 = vsub.f32 %v76, %v1927
    %v1929 = vand.u32 %v1928, 4294901760
    %1930 = vmatpush1.msra.mxu0 %v1929
    %1931 = vmatprep.subr.mxu0 0.0
    %v1932 = vand.u32 %v75, 4294901760
    %v1933 = vsub.f32 %v75, %v1932
    %v1934 = vand.u32 %v1933, 4294901760
    %1935 = vmatpush1.msra.mxu0 %v1934
    %1936 = vmatprep.subr.mxu0 0.0
    %v1937 = vand.u32 %v74, 4294901760
    %v1938 = vsub.f32 %v74, %v1937
    %v1939 = vand.u32 %v1938, 4294901760
    %1940 = vmatpush1.msra.mxu0 %v1939
    %1941 = vmatprep.subr.mxu0 0.0
    %v1942 = vand.u32 %v73, 4294901760
    %v1943 = vsub.f32 %v73, %v1942
    %v1944 = vand.u32 %v1943, 4294901760
    %1945 = vmatpush1.msra.mxu0 %v1944
    %1946 = vmatprep.subr.mxu0 0.0
    %v1947 = vand.u32 %v72, 4294901760
    %v1948 = vsub.f32 %v72, %v1947
    %v1949 = vand.u32 %v1948, 4294901760
    %1950 = vmatpush1.msra.mxu0 %v1949
    %1951 = vmatprep.subr.mxu0 0.0
    %v1952 = vand.u32 %v71, 4294901760
    %v1953 = vsub.f32 %v71, %v1952
    %v1954 = vand.u32 %v1953, 4294901760
    %1955 = vmatpush1.msra.mxu0 %v1954
    %1956 = vmatprep.subr.mxu0 0.0
    %v1957 = vand.u32 %v70, 4294901760
    %v1958 = vsub.f32 %v70, %v1957
    %v1959 = vand.u32 %v1958, 4294901760
    %1960 = vmatpush1.msra.mxu0 %v1959
    %1961 = vmatprep.subr.mxu0 0.0
    %1962 = vmatpush2.msra.mxu0 0.0
    %1963 = vmatprep.subr.mxu0 0.0
    %1964 = vmatpush2.msra.mxu0 0.0
    %1965 = vmatprep.subr.mxu0 0.0
    %1966 = vmatpush2.msra.mxu0 0.0
    %1967 = vmatprep.subr.mxu0 0.0
    %1968 = vmatpush2.msra.mxu0 0.0
    %1969 = vmatprep.subr.mxu0 0.0
    %1970 = vmatpush2.msra.mxu0 0.0
    %1971 = vmatprep.subr.mxu0 0.0
    %1972 = vmatpush2.msra.mxu0 0.0
    %1973 = vmatprep.subr.mxu0 0.0
    %1974 = vmatpush2.msra.mxu0 0.0
    %1975 = vmatprep.subr.mxu0 0.0
    %1976 = vmatpush2.msra.mxu0 0.0
    %1977 = vmatprep.subr.mxu0 0.0
    %1978 = vmatpush2.msra.mxu0 0.0
    %1979 = vmatprep.subr.mxu0 0.0
    %1980 = vmatpush2.msra.mxu0 0.0
    %1981 = vmatprep.subr.mxu0 0.0
    %1982 = vmatpush2.msra.mxu0 0.0
    %1983 = vmatprep.subr.mxu0 0.0
    %1984 = vmatpush2.msra.mxu0 0.0
    %1985 = vmatprep.subr.mxu0 0.0
    %1986 = vmatpush2.msra.mxu0 0.0
    %1987 = vmatprep.subr.mxu0 0.0
    %1988 = vmatpush2.msra.mxu0 0.0
    %1989 = vmatprep.subr.mxu0 0.0
    %1990 = vmatpush2.msra.mxu0 0.0
    %1991 = vmatprep.subr.mxu0 0.0
    %1992 = vmatpush2.msra.mxu0 0.0
    %1993 = vmatprep.mubr.f32.mxu0 0.0
    %v1994 = vand.u32 %v1439, 4294901760
    %1995 = vmatmul.mubr.f32.gmra.mxu0 %v1994
    %v1996 = vpop.f32.mrf.mxu0
    %v1997 = vadd.f32 %v1878, %v1996
    %v1998 = vpop.f32.mrf.mxu0
    %1999 = vdwg.mxu0
    %2000 = vmatprep.subr.mxu0 0.0
    %v2001 = vand.u32 %v85, 4294901760
    %2002 = vmatpush1.msra.mxu0 %v2001
    %2003 = vmatprep.subr.mxu0 0.0
    %v2004 = vand.u32 %v84, 4294901760
    %2005 = vmatpush1.msra.mxu0 %v2004
    %2006 = vmatprep.subr.mxu0 0.0
    %v2007 = vand.u32 %v83, 4294901760
    %2008 = vmatpush1.msra.mxu0 %v2007
    %2009 = vmatprep.subr.mxu0 0.0
    %v2010 = vand.u32 %v82, 4294901760
    %2011 = vmatpush1.msra.mxu0 %v2010
    %2012 = vmatprep.subr.mxu0 0.0
    %v2013 = vand.u32 %v81, 4294901760
    %2014 = vmatpush1.msra.mxu0 %v2013
    %2015 = vmatprep.subr.mxu0 0.0
    %v2016 = vand.u32 %v80, 4294901760
    %2017 = vmatpush1.msra.mxu0 %v2016
    %2018 = vmatprep.subr.mxu0 0.0
    %v2019 = vand.u32 %v79, 4294901760
    %2020 = vmatpush1.msra.mxu0 %v2019
    %2021 = vmatprep.subr.mxu0 0.0
    %v2022 = vand.u32 %v78, 4294901760
    %2023 = vmatpush1.msra.mxu0 %v2022
    %2024 = vmatprep.subr.mxu0 0.0
    %v2025 = vand.u32 %v77, 4294901760
    %2026 = vmatpush1.msra.mxu0 %v2025
    %2027 = vmatprep.subr.mxu0 0.0
    %v2028 = vand.u32 %v76, 4294901760
    %2029 = vmatpush1.msra.mxu0 %v2028
    %2030 = vmatprep.subr.mxu0 0.0
    %v2031 = vand.u32 %v75, 4294901760
    %2032 = vmatpush1.msra.mxu0 %v2031
    %2033 = vmatprep.subr.mxu0 0.0
    %v2034 = vand.u32 %v74, 4294901760
    %2035 = vmatpush1.msra.mxu0 %v2034
    %2036 = vmatprep.subr.mxu0 0.0
    %v2037 = vand.u32 %v73, 4294901760
    %2038 = vmatpush1.msra.mxu0 %v2037
    %2039 = vmatprep.subr.mxu0 0.0
    %v2040 = vand.u32 %v72, 4294901760
    %2041 = vmatpush1.msra.mxu0 %v2040
    %2042 = vmatprep.subr.mxu0 0.0
    %v2043 = vand.u32 %v71, 4294901760
    %2044 = vmatpush1.msra.mxu0 %v2043
    %2045 = vmatprep.subr.mxu0 0.0
    %v2046 = vand.u32 %v70, 4294901760
    %2047 = vmatpush1.msra.mxu0 %v2046
    %2048 = vmatprep.subr.mxu0 0.0
    %2049 = vmatpush2.msra.mxu0 0.0
    %2050 = vmatprep.subr.mxu0 0.0
    %2051 = vmatpush2.msra.mxu0 0.0
    %2052 = vmatprep.subr.mxu0 0.0
    %2053 = vmatpush2.msra.mxu0 0.0
    %2054 = vmatprep.subr.mxu0 0.0
    %2055 = vmatpush2.msra.mxu0 0.0
    %2056 = vmatprep.subr.mxu0 0.0
    %2057 = vmatpush2.msra.mxu0 0.0
    %2058 = vmatprep.subr.mxu0 0.0
    %2059 = vmatpush2.msra.mxu0 0.0
    %2060 = vmatprep.subr.mxu0 0.0
    %2061 = vmatpush2.msra.mxu0 0.0
    %2062 = vmatprep.subr.mxu0 0.0
    %2063 = vmatpush2.msra.mxu0 0.0
    %2064 = vmatprep.subr.mxu0 0.0
    %2065 = vmatpush2.msra.mxu0 0.0
    %2066 = vmatprep.subr.mxu0 0.0
    %2067 = vmatpush2.msra.mxu0 0.0
    %2068 = vmatprep.subr.mxu0 0.0
    %2069 = vmatpush2.msra.mxu0 0.0
    %2070 = vmatprep.subr.mxu0 0.0
    %2071 = vmatpush2.msra.mxu0 0.0
    %2072 = vmatprep.subr.mxu0 0.0
    %2073 = vmatpush2.msra.mxu0 0.0
    %2074 = vmatprep.subr.mxu0 0.0
    %2075 = vmatpush2.msra.mxu0 0.0
    %2076 = vmatprep.subr.mxu0 0.0
    %2077 = vmatpush2.msra.mxu0 0.0
    %2078 = vmatprep.subr.mxu0 0.0
    %2079 = vmatpush2.msra.mxu0 0.0
    %2080 = vmatprep.mubr.f32.mxu0 0.0
    %v2081 = vand.u32 %v1439, 4294901760
    %2082 = vmatmul.mubr.f32.gmra.mxu0 %v2081
    %v2083 = vpop.f32.mrf.mxu0
    %v2084 = vadd.f32 %v1997, %v2083
    %v2085 = vpop.f32.mrf.mxu0
    %2086 = vdwg.mxu0
    %v2087 = vand.u32 2147483647, %v2084
    %v2088 = vsub.f32 0.0, %v2087
    %v2089 = vmul.f32 %v2088, 1.442695
    %v2090 = vpow.pop %v2089
    %v2091 = vadd.f32 %v2090, 1.0
    %v2092 = vrcp.pop %v2091
    %v2093 = vmul.f32 %v2091, %v2092
    %v2094 = vsub.f32 2.0, %v2093
    %v2095 = vmul.f32 %v2092, %v2094
    %vm2096 = vcmp.ge.f32.partialorder %v2084, 0.0
    %v2097 = vmul.f32 %v2090, %v2095
    %v2098 = vsel %vm2096, %v2095, %v2097
    %v2099 = vsub.f32 1.0, %v2098
    %v2100 = vlaneseq
    %v2101 = vshrl.u32 %v2100, 7
    %v2102 = vsub.s32 0, %v2101
    %v2103 = vrot.slane %v1441, %v2102
    %v2104 = vmul.f32 %v2103, %v2099
    %v2105 = vadd.f32 %v2098, %v2104
    %v2106 = vmax.f32 %v2084, 0.0
    %v2107 = vlog2.pop %v2091
    %v2108 = vmul.f32 %v2107, 0.6931472
    %v2109 = vadd.f32 %v2106, %v2108
    %2110 = vmatprep.subr.mxu0 0.0
    %v2111 = vand.u32 %v101, 4294901760
    %2112 = vmatpush1.msra.mxu0 %v2111
    %2113 = vmatprep.subr.mxu0 0.0
    %v2114 = vand.u32 %v100, 4294901760
    %2115 = vmatpush1.msra.mxu0 %v2114
    %2116 = vmatprep.subr.mxu0 0.0
    %v2117 = vand.u32 %v99, 4294901760
    %2118 = vmatpush1.msra.mxu0 %v2117
    %2119 = vmatprep.subr.mxu0 0.0
    %v2120 = vand.u32 %v98, 4294901760
    %2121 = vmatpush1.msra.mxu0 %v2120
    %2122 = vmatprep.subr.mxu0 0.0
    %v2123 = vand.u32 %v97, 4294901760
    %2124 = vmatpush1.msra.mxu0 %v2123
    %2125 = vmatprep.subr.mxu0 0.0
    %v2126 = vand.u32 %v96, 4294901760
    %2127 = vmatpush1.msra.mxu0 %v2126
    %2128 = vmatprep.subr.mxu0 0.0
    %v2129 = vand.u32 %v95, 4294901760
    %2130 = vmatpush1.msra.mxu0 %v2129
    %2131 = vmatprep.subr.mxu0 0.0
    %v2132 = vand.u32 %v94, 4294901760
    %2133 = vmatpush1.msra.mxu0 %v2132
    %2134 = vmatprep.subr.mxu0 0.0
    %v2135 = vand.u32 %v93, 4294901760
    %2136 = vmatpush1.msra.mxu0 %v2135
    %2137 = vmatprep.subr.mxu0 0.0
    %v2138 = vand.u32 %v92, 4294901760
    %2139 = vmatpush1.msra.mxu0 %v2138
    %2140 = vmatprep.subr.mxu0 0.0
    %v2141 = vand.u32 %v91, 4294901760
    %2142 = vmatpush1.msra.mxu0 %v2141
    %2143 = vmatprep.subr.mxu0 0.0
    %v2144 = vand.u32 %v90, 4294901760
    %2145 = vmatpush1.msra.mxu0 %v2144
    %2146 = vmatprep.subr.mxu0 0.0
    %v2147 = vand.u32 %v89, 4294901760
    %2148 = vmatpush1.msra.mxu0 %v2147
    %2149 = vmatprep.subr.mxu0 0.0
    %v2150 = vand.u32 %v88, 4294901760
    %2151 = vmatpush1.msra.mxu0 %v2150
    %2152 = vmatprep.subr.mxu0 0.0
    %v2153 = vand.u32 %v87, 4294901760
    %2154 = vmatpush1.msra.mxu0 %v2153
    %2155 = vmatprep.subr.mxu0 0.0
    %v2156 = vand.u32 %v86, 4294901760
    %2157 = vmatpush1.msra.mxu0 %v2156
    %2158 = vmatprep.subr.mxu0 0.0
    %2159 = vmatpush2.msra.mxu0 0.0
    %2160 = vmatprep.subr.mxu0 0.0
    %2161 = vmatpush2.msra.mxu0 0.0
    %2162 = vmatprep.subr.mxu0 0.0
    %2163 = vmatpush2.msra.mxu0 0.0
    %2164 = vmatprep.subr.mxu0 0.0
    %2165 = vmatpush2.msra.mxu0 0.0
    %2166 = vmatprep.subr.mxu0 0.0
    %2167 = vmatpush2.msra.mxu0 0.0
    %2168 = vmatprep.subr.mxu0 0.0
    %2169 = vmatpush2.msra.mxu0 0.0
    %2170 = vmatprep.subr.mxu0 0.0
    %2171 = vmatpush2.msra.mxu0 0.0
    %2172 = vmatprep.subr.mxu0 0.0
    %2173 = vmatpush2.msra.mxu0 0.0
    %2174 = vmatprep.subr.mxu0 0.0
    %2175 = vmatpush2.msra.mxu0 0.0
    %2176 = vmatprep.subr.mxu0 0.0
    %2177 = vmatpush2.msra.mxu0 0.0
    %2178 = vmatprep.subr.mxu0 0.0
    %2179 = vmatpush2.msra.mxu0 0.0
    %2180 = vmatprep.subr.mxu0 0.0
    %2181 = vmatpush2.msra.mxu0 0.0
    %2182 = vmatprep.subr.mxu0 0.0
    %2183 = vmatpush2.msra.mxu0 0.0
    %2184 = vmatprep.subr.mxu0 0.0
    %2185 = vmatpush2.msra.mxu0 0.0
    %2186 = vmatprep.subr.mxu0 0.0
    %2187 = vmatpush2.msra.mxu0 0.0
    %2188 = vmatprep.subr.mxu0 0.0
    %2189 = vmatpush2.msra.mxu0 0.0
    %2190 = vmatprep.mubr.f32.mxu0 0.0
    %v2191 = vand.u32 %v2109, 4294901760
    %v2192 = vsub.f32 %v2109, %v2191
    %v2193 = vand.u32 %v2192, 4294901760
    %v2194 = vsub.f32 %v2192, %v2193
    %v2195 = vand.u32 %v2194, 4294901760
    %2196 = vmatmul.mubr.f32.gmra.mxu0 %v2195
    %v2197 = vpop.f32.mrf.mxu0
    %v2198 = vadd.f32 0.0, %v2197
    %v2199 = vpop.f32.mrf.mxu0
    %2200 = vdwg.mxu0
    %2201 = vmatprep.subr.mxu0 0.0
    %v2202 = vand.u32 %v101, 4294901760
    %v2203 = vsub.f32 %v101, %v2202
    %v2204 = vand.u32 %v2203, 4294901760
    %v2205 = vsub.f32 %v2203, %v2204
    %v2206 = vand.u32 %v2205, 4294901760
    %2207 = vmatpush1.msra.mxu0 %v2206
    %2208 = vmatprep.subr.mxu0 0.0
    %v2209 = vand.u32 %v100, 4294901760
    %v2210 = vsub.f32 %v100, %v2209
    %v2211 = vand.u32 %v2210, 4294901760
    %v2212 = vsub.f32 %v2210, %v2211
    %v2213 = vand.u32 %v2212, 4294901760
    %2214 = vmatpush1.msra.mxu0 %v2213
    %2215 = vmatprep.subr.mxu0 0.0
    %v2216 = vand.u32 %v99, 4294901760
    %v2217 = vsub.f32 %v99, %v2216
    %v2218 = vand.u32 %v2217, 4294901760
    %v2219 = vsub.f32 %v2217, %v2218
    %v2220 = vand.u32 %v2219, 4294901760
    %2221 = vmatpush1.msra.mxu0 %v2220
    %2222 = vmatprep.subr.mxu0 0.0
    %v2223 = vand.u32 %v98, 4294901760
    %v2224 = vsub.f32 %v98, %v2223
    %v2225 = vand.u32 %v2224, 4294901760
    %v2226 = vsub.f32 %v2224, %v2225
    %v2227 = vand.u32 %v2226, 4294901760
    %2228 = vmatpush1.msra.mxu0 %v2227
    %2229 = vmatprep.subr.mxu0 0.0
    %v2230 = vand.u32 %v97, 4294901760
    %v2231 = vsub.f32 %v97, %v2230
    %v2232 = vand.u32 %v2231, 4294901760
    %v2233 = vsub.f32 %v2231, %v2232
    %v2234 = vand.u32 %v2233, 4294901760
    %2235 = vmatpush1.msra.mxu0 %v2234
    %2236 = vmatprep.subr.mxu0 0.0
    %v2237 = vand.u32 %v96, 4294901760
    %v2238 = vsub.f32 %v96, %v2237
    %v2239 = vand.u32 %v2238, 4294901760
    %v2240 = vsub.f32 %v2238, %v2239
    %v2241 = vand.u32 %v2240, 4294901760
    %2242 = vmatpush1.msra.mxu0 %v2241
    %2243 = vmatprep.subr.mxu0 0.0
    %v2244 = vand.u32 %v95, 4294901760
    %v2245 = vsub.f32 %v95, %v2244
    %v2246 = vand.u32 %v2245, 4294901760
    %v2247 = vsub.f32 %v2245, %v2246
    %v2248 = vand.u32 %v2247, 4294901760
    %2249 = vmatpush1.msra.mxu0 %v2248
    %2250 = vmatprep.subr.mxu0 0.0
    %v2251 = vand.u32 %v94, 4294901760
    %v2252 = vsub.f32 %v94, %v2251
    %v2253 = vand.u32 %v2252, 4294901760
    %v2254 = vsub.f32 %v2252, %v2253
    %v2255 = vand.u32 %v2254, 4294901760
    %2256 = vmatpush1.msra.mxu0 %v2255
    %2257 = vmatprep.subr.mxu0 0.0
    %v2258 = vand.u32 %v93, 4294901760
    %v2259 = vsub.f32 %v93, %v2258
    %v2260 = vand.u32 %v2259, 4294901760
    %v2261 = vsub.f32 %v2259, %v2260
    %v2262 = vand.u32 %v2261, 4294901760
    %2263 = vmatpush1.msra.mxu0 %v2262
    %2264 = vmatprep.subr.mxu0 0.0
    %v2265 = vand.u32 %v92, 4294901760
    %v2266 = vsub.f32 %v92, %v2265
    %v2267 = vand.u32 %v2266, 4294901760
    %v2268 = vsub.f32 %v2266, %v2267
    %v2269 = vand.u32 %v2268, 4294901760
    %2270 = vmatpush1.msra.mxu0 %v2269
    %2271 = vmatprep.subr.mxu0 0.0
    %v2272 = vand.u32 %v91, 4294901760
    %v2273 = vsub.f32 %v91, %v2272
    %v2274 = vand.u32 %v2273, 4294901760
    %v2275 = vsub.f32 %v2273, %v2274
    %v2276 = vand.u32 %v2275, 4294901760
    %2277 = vmatpush1.msra.mxu0 %v2276
    %2278 = vmatprep.subr.mxu0 0.0
    %v2279 = vand.u32 %v90, 4294901760
    %v2280 = vsub.f32 %v90, %v2279
    %v2281 = vand.u32 %v2280, 4294901760
    %v2282 = vsub.f32 %v2280, %v2281
    %v2283 = vand.u32 %v2282, 4294901760
    %2284 = vmatpush1.msra.mxu0 %v2283
    %2285 = vmatprep.subr.mxu0 0.0
    %v2286 = vand.u32 %v89, 4294901760
    %v2287 = vsub.f32 %v89, %v2286
    %v2288 = vand.u32 %v2287, 4294901760
    %v2289 = vsub.f32 %v2287, %v2288
    %v2290 = vand.u32 %v2289, 4294901760
    %2291 = vmatpush1.msra.mxu0 %v2290
    %2292 = vmatprep.subr.mxu0 0.0
    %v2293 = vand.u32 %v88, 4294901760
    %v2294 = vsub.f32 %v88, %v2293
    %v2295 = vand.u32 %v2294, 4294901760
    %v2296 = vsub.f32 %v2294, %v2295
    %v2297 = vand.u32 %v2296, 4294901760
    %2298 = vmatpush1.msra.mxu0 %v2297
    %2299 = vmatprep.subr.mxu0 0.0
    %v2300 = vand.u32 %v87, 4294901760
    %v2301 = vsub.f32 %v87, %v2300
    %v2302 = vand.u32 %v2301, 4294901760
    %v2303 = vsub.f32 %v2301, %v2302
    %v2304 = vand.u32 %v2303, 4294901760
    %2305 = vmatpush1.msra.mxu0 %v2304
    %2306 = vmatprep.subr.mxu0 0.0
    %v2307 = vand.u32 %v86, 4294901760
    %v2308 = vsub.f32 %v86, %v2307
    %v2309 = vand.u32 %v2308, 4294901760
    %v2310 = vsub.f32 %v2308, %v2309
    %v2311 = vand.u32 %v2310, 4294901760
    %2312 = vmatpush1.msra.mxu0 %v2311
    %2313 = vmatprep.subr.mxu0 0.0
    %2314 = vmatpush2.msra.mxu0 0.0
    %2315 = vmatprep.subr.mxu0 0.0
    %2316 = vmatpush2.msra.mxu0 0.0
    %2317 = vmatprep.subr.mxu0 0.0
    %2318 = vmatpush2.msra.mxu0 0.0
    %2319 = vmatprep.subr.mxu0 0.0
    %2320 = vmatpush2.msra.mxu0 0.0
    %2321 = vmatprep.subr.mxu0 0.0
    %2322 = vmatpush2.msra.mxu0 0.0
    %2323 = vmatprep.subr.mxu0 0.0
    %2324 = vmatpush2.msra.mxu0 0.0
    %2325 = vmatprep.subr.mxu0 0.0
    %2326 = vmatpush2.msra.mxu0 0.0
    %2327 = vmatprep.subr.mxu0 0.0
    %2328 = vmatpush2.msra.mxu0 0.0
    %2329 = vmatprep.subr.mxu0 0.0
    %2330 = vmatpush2.msra.mxu0 0.0
    %2331 = vmatprep.subr.mxu0 0.0
    %2332 = vmatpush2.msra.mxu0 0.0
    %2333 = vmatprep.subr.mxu0 0.0
    %2334 = vmatpush2.msra.mxu0 0.0
    %2335 = vmatprep.subr.mxu0 0.0
    %2336 = vmatpush2.msra.mxu0 0.0
    %2337 = vmatprep.subr.mxu0 0.0
    %2338 = vmatpush2.msra.mxu0 0.0
    %2339 = vmatprep.subr.mxu0 0.0
    %2340 = vmatpush2.msra.mxu0 0.0
    %2341 = vmatprep.subr.mxu0 0.0
    %2342 = vmatpush2.msra.mxu0 0.0
    %2343 = vmatprep.subr.mxu0 0.0
    %2344 = vmatpush2.msra.mxu0 0.0
    %2345 = vmatprep.mubr.f32.mxu0 0.0
    %v2346 = vand.u32 %v2109, 4294901760
    %2347 = vmatmul.mubr.f32.gmra.mxu0 %v2346
    %v2348 = vpop.f32.mrf.mxu0
    %v2349 = vadd.f32 %v2198, %v2348
    %v2350 = vpop.f32.mrf.mxu0
    %2351 = vdwg.mxu0
    %2352 = vmatprep.subr.mxu0 0.0
    %v2353 = vand.u32 %v101, 4294901760
    %v2354 = vsub.f32 %v101, %v2353
    %2355 = vmatpush1.msra.mxu0 %v2354
    %2356 = vmatprep.subr.mxu0 0.0
    %v2357 = vand.u32 %v100, 4294901760
    %v2358 = vsub.f32 %v100, %v2357
    %2359 = vmatpush1.msra.mxu0 %v2358
    %2360 = vmatprep.subr.mxu0 0.0
    %v2361 = vand.u32 %v99, 4294901760
    %v2362 = vsub.f32 %v99, %v2361
    %2363 = vmatpush1.msra.mxu0 %v2362
    %2364 = vmatprep.subr.mxu0 0.0
    %v2365 = vand.u32 %v98, 4294901760
    %v2366 = vsub.f32 %v98, %v2365
    %2367 = vmatpush1.msra.mxu0 %v2366
    %2368 = vmatprep.subr.mxu0 0.0
    %v2369 = vand.u32 %v97, 4294901760
    %v2370 = vsub.f32 %v97, %v2369
    %2371 = vmatpush1.msra.mxu0 %v2370
    %2372 = vmatprep.subr.mxu0 0.0
    %v2373 = vand.u32 %v96, 4294901760
    %v2374 = vsub.f32 %v96, %v2373
    %2375 = vmatpush1.msra.mxu0 %v2374
    %2376 = vmatprep.subr.mxu0 0.0
    %v2377 = vand.u32 %v95, 4294901760
    %v2378 = vsub.f32 %v95, %v2377
    %2379 = vmatpush1.msra.mxu0 %v2378
    %2380 = vmatprep.subr.mxu0 0.0
    %v2381 = vand.u32 %v94, 4294901760
    %v2382 = vsub.f32 %v94, %v2381
    %2383 = vmatpush1.msra.mxu0 %v2382
    %2384 = vmatprep.subr.mxu0 0.0
    %v2385 = vand.u32 %v93, 4294901760
    %v2386 = vsub.f32 %v93, %v2385
    %2387 = vmatpush1.msra.mxu0 %v2386
    %2388 = vmatprep.subr.mxu0 0.0
    %v2389 = vand.u32 %v92, 4294901760
    %v2390 = vsub.f32 %v92, %v2389
    %2391 = vmatpush1.msra.mxu0 %v2390
    %2392 = vmatprep.subr.mxu0 0.0
    %v2393 = vand.u32 %v91, 4294901760
    %v2394 = vsub.f32 %v91, %v2393
    %2395 = vmatpush1.msra.mxu0 %v2394
    %2396 = vmatprep.subr.mxu0 0.0
    %v2397 = vand.u32 %v90, 4294901760
    %v2398 = vsub.f32 %v90, %v2397
    %2399 = vmatpush1.msra.mxu0 %v2398
    %2400 = vmatprep.subr.mxu0 0.0
    %v2401 = vand.u32 %v89, 4294901760
    %v2402 = vsub.f32 %v89, %v2401
    %2403 = vmatpush1.msra.mxu0 %v2402
    %2404 = vmatprep.subr.mxu0 0.0
    %v2405 = vand.u32 %v88, 4294901760
    %v2406 = vsub.f32 %v88, %v2405
    %2407 = vmatpush1.msra.mxu0 %v2406
    %2408 = vmatprep.subr.mxu0 0.0
    %v2409 = vand.u32 %v87, 4294901760
    %v2410 = vsub.f32 %v87, %v2409
    %2411 = vmatpush1.msra.mxu0 %v2410
    %2412 = vmatprep.subr.mxu0 0.0
    %v2413 = vand.u32 %v86, 4294901760
    %v2414 = vsub.f32 %v86, %v2413
    %2415 = vmatpush1.msra.mxu0 %v2414
    %2416 = vmatprep.subr.mxu0 0.0
    %2417 = vmatpush2.msra.mxu0 0.0
    %2418 = vmatprep.subr.mxu0 0.0
    %2419 = vmatpush2.msra.mxu0 0.0
    %2420 = vmatprep.subr.mxu0 0.0
    %2421 = vmatpush2.msra.mxu0 0.0
    %2422 = vmatprep.subr.mxu0 0.0
    %2423 = vmatpush2.msra.mxu0 0.0
    %2424 = vmatprep.subr.mxu0 0.0
    %2425 = vmatpush2.msra.mxu0 0.0
    %2426 = vmatprep.subr.mxu0 0.0
    %2427 = vmatpush2.msra.mxu0 0.0
    %2428 = vmatprep.subr.mxu0 0.0
    %2429 = vmatpush2.msra.mxu0 0.0
    %2430 = vmatprep.subr.mxu0 0.0
    %2431 = vmatpush2.msra.mxu0 0.0
    %2432 = vmatprep.subr.mxu0 0.0
    %2433 = vmatpush2.msra.mxu0 0.0
    %2434 = vmatprep.subr.mxu0 0.0
    %2435 = vmatpush2.msra.mxu0 0.0
    %2436 = vmatprep.subr.mxu0 0.0
    %2437 = vmatpush2.msra.mxu0 0.0
    %2438 = vmatprep.subr.mxu0 0.0
    %2439 = vmatpush2.msra.mxu0 0.0
    %2440 = vmatprep.subr.mxu0 0.0
    %2441 = vmatpush2.msra.mxu0 0.0
    %2442 = vmatprep.subr.mxu0 0.0
    %2443 = vmatpush2.msra.mxu0 0.0
    %2444 = vmatprep.subr.mxu0 0.0
    %2445 = vmatpush2.msra.mxu0 0.0
    %2446 = vmatprep.subr.mxu0 0.0
    %2447 = vmatpush2.msra.mxu0 0.0
    %2448 = vmatprep.mubr.f32.mxu0 0.0
    %v2449 = vand.u32 %v2109, 4294901760
    %v2450 = vsub.f32 %v2109, %v2449
    %2451 = vmatmul.mubr.f32.gmra.mxu0 %v2450
    %v2452 = vpop.f32.mrf.mxu0
    %v2453 = vadd.f32 %v2349, %v2452
    %v2454 = vpop.f32.mrf.mxu0
    %2455 = vdwg.mxu0
    %2456 = vmatprep.subr.mxu0 0.0
    %v2457 = vand.u32 %v101, 4294901760
    %2458 = vmatpush1.msra.mxu0 %v2457
    %2459 = vmatprep.subr.mxu0 0.0
    %v2460 = vand.u32 %v100, 4294901760
    %2461 = vmatpush1.msra.mxu0 %v2460
    %2462 = vmatprep.subr.mxu0 0.0
    %v2463 = vand.u32 %v99, 4294901760
    %2464 = vmatpush1.msra.mxu0 %v2463
    %2465 = vmatprep.subr.mxu0 0.0
    %v2466 = vand.u32 %v98, 4294901760
    %2467 = vmatpush1.msra.mxu0 %v2466
    %2468 = vmatprep.subr.mxu0 0.0
    %v2469 = vand.u32 %v97, 4294901760
    %2470 = vmatpush1.msra.mxu0 %v2469
    %2471 = vmatprep.subr.mxu0 0.0
    %v2472 = vand.u32 %v96, 4294901760
    %2473 = vmatpush1.msra.mxu0 %v2472
    %2474 = vmatprep.subr.mxu0 0.0
    %v2475 = vand.u32 %v95, 4294901760
    %2476 = vmatpush1.msra.mxu0 %v2475
    %2477 = vmatprep.subr.mxu0 0.0
    %v2478 = vand.u32 %v94, 4294901760
    %2479 = vmatpush1.msra.mxu0 %v2478
    %2480 = vmatprep.subr.mxu0 0.0
    %v2481 = vand.u32 %v93, 4294901760
    %2482 = vmatpush1.msra.mxu0 %v2481
    %2483 = vmatprep.subr.mxu0 0.0
    %v2484 = vand.u32 %v92, 4294901760
    %2485 = vmatpush1.msra.mxu0 %v2484
    %2486 = vmatprep.subr.mxu0 0.0
    %v2487 = vand.u32 %v91, 4294901760
    %2488 = vmatpush1.msra.mxu0 %v2487
    %2489 = vmatprep.subr.mxu0 0.0
    %v2490 = vand.u32 %v90, 4294901760
    %2491 = vmatpush1.msra.mxu0 %v2490
    %2492 = vmatprep.subr.mxu0 0.0
    %v2493 = vand.u32 %v89, 4294901760
    %2494 = vmatpush1.msra.mxu0 %v2493
    %2495 = vmatprep.subr.mxu0 0.0
    %v2496 = vand.u32 %v88, 4294901760
    %2497 = vmatpush1.msra.mxu0 %v2496
    %2498 = vmatprep.subr.mxu0 0.0
    %v2499 = vand.u32 %v87, 4294901760
    %2500 = vmatpush1.msra.mxu0 %v2499
    %2501 = vmatprep.subr.mxu0 0.0
    %v2502 = vand.u32 %v86, 4294901760
    %2503 = vmatpush1.msra.mxu0 %v2502
    %2504 = vmatprep.subr.mxu0 0.0
    %2505 = vmatpush2.msra.mxu0 0.0
    %2506 = vmatprep.subr.mxu0 0.0
    %2507 = vmatpush2.msra.mxu0 0.0
    %2508 = vmatprep.subr.mxu0 0.0
    %2509 = vmatpush2.msra.mxu0 0.0
    %2510 = vmatprep.subr.mxu0 0.0
    %2511 = vmatpush2.msra.mxu0 0.0
    %2512 = vmatprep.subr.mxu0 0.0
    %2513 = vmatpush2.msra.mxu0 0.0
    %2514 = vmatprep.subr.mxu0 0.0
    %2515 = vmatpush2.msra.mxu0 0.0
    %2516 = vmatprep.subr.mxu0 0.0
    %2517 = vmatpush2.msra.mxu0 0.0
    %2518 = vmatprep.subr.mxu0 0.0
    %2519 = vmatpush2.msra.mxu0 0.0
    %2520 = vmatprep.subr.mxu0 0.0
    %2521 = vmatpush2.msra.mxu0 0.0
    %2522 = vmatprep.subr.mxu0 0.0
    %2523 = vmatpush2.msra.mxu0 0.0
    %2524 = vmatprep.subr.mxu0 0.0
    %2525 = vmatpush2.msra.mxu0 0.0
    %2526 = vmatprep.subr.mxu0 0.0
    %2527 = vmatpush2.msra.mxu0 0.0
    %2528 = vmatprep.subr.mxu0 0.0
    %2529 = vmatpush2.msra.mxu0 0.0
    %2530 = vmatprep.subr.mxu0 0.0
    %2531 = vmatpush2.msra.mxu0 0.0
    %2532 = vmatprep.subr.mxu0 0.0
    %2533 = vmatpush2.msra.mxu0 0.0
    %2534 = vmatprep.subr.mxu0 0.0
    %2535 = vmatpush2.msra.mxu0 0.0
    %2536 = vmatprep.mubr.f32.mxu0 0.0
    %v2537 = vand.u32 %v2109, 4294901760
    %v2538 = vsub.f32 %v2109, %v2537
    %v2539 = vand.u32 %v2538, 4294901760
    %2540 = vmatmul.mubr.f32.gmra.mxu0 %v2539
    %v2541 = vpop.f32.mrf.mxu0
    %v2542 = vadd.f32 %v2453, %v2541
    %v2543 = vpop.f32.mrf.mxu0
    %2544 = vdwg.mxu0
    %2545 = vmatprep.subr.mxu0 0.0
    %v2546 = vand.u32 %v101, 4294901760
    %v2547 = vsub.f32 %v101, %v2546
    %v2548 = vand.u32 %v2547, 4294901760
    %2549 = vmatpush1.msra.mxu0 %v2548
    %2550 = vmatprep.subr.mxu0 0.0
    %v2551 = vand.u32 %v100, 4294901760
    %v2552 = vsub.f32 %v100, %v2551
    %v2553 = vand.u32 %v2552, 4294901760
    %2554 = vmatpush1.msra.mxu0 %v2553
    %2555 = vmatprep.subr.mxu0 0.0
    %v2556 = vand.u32 %v99, 4294901760
    %v2557 = vsub.f32 %v99, %v2556
    %v2558 = vand.u32 %v2557, 4294901760
    %2559 = vmatpush1.msra.mxu0 %v2558
    %2560 = vmatprep.subr.mxu0 0.0
    %v2561 = vand.u32 %v98, 4294901760
    %v2562 = vsub.f32 %v98, %v2561
    %v2563 = vand.u32 %v2562, 4294901760
    %2564 = vmatpush1.msra.mxu0 %v2563
    %2565 = vmatprep.subr.mxu0 0.0
    %v2566 = vand.u32 %v97, 4294901760
    %v2567 = vsub.f32 %v97, %v2566
    %v2568 = vand.u32 %v2567, 4294901760
    %2569 = vmatpush1.msra.mxu0 %v2568
    %2570 = vmatprep.subr.mxu0 0.0
    %v2571 = vand.u32 %v96, 4294901760
    %v2572 = vsub.f32 %v96, %v2571
    %v2573 = vand.u32 %v2572, 4294901760
    %2574 = vmatpush1.msra.mxu0 %v2573
    %2575 = vmatprep.subr.mxu0 0.0
    %v2576 = vand.u32 %v95, 4294901760
    %v2577 = vsub.f32 %v95, %v2576
    %v2578 = vand.u32 %v2577, 4294901760
    %2579 = vmatpush1.msra.mxu0 %v2578
    %2580 = vmatprep.subr.mxu0 0.0
    %v2581 = vand.u32 %v94, 4294901760
    %v2582 = vsub.f32 %v94, %v2581
    %v2583 = vand.u32 %v2582, 4294901760
    %2584 = vmatpush1.msra.mxu0 %v2583
    %2585 = vmatprep.subr.mxu0 0.0
    %v2586 = vand.u32 %v93, 4294901760
    %v2587 = vsub.f32 %v93, %v2586
    %v2588 = vand.u32 %v2587, 4294901760
    %2589 = vmatpush1.msra.mxu0 %v2588
    %2590 = vmatprep.subr.mxu0 0.0
    %v2591 = vand.u32 %v92, 4294901760
    %v2592 = vsub.f32 %v92, %v2591
    %v2593 = vand.u32 %v2592, 4294901760
    %2594 = vmatpush1.msra.mxu0 %v2593
    %2595 = vmatprep.subr.mxu0 0.0
    %v2596 = vand.u32 %v91, 4294901760
    %v2597 = vsub.f32 %v91, %v2596
    %v2598 = vand.u32 %v2597, 4294901760
    %2599 = vmatpush1.msra.mxu0 %v2598
    %2600 = vmatprep.subr.mxu0 0.0
    %v2601 = vand.u32 %v90, 4294901760
    %v2602 = vsub.f32 %v90, %v2601
    %v2603 = vand.u32 %v2602, 4294901760
    %2604 = vmatpush1.msra.mxu0 %v2603
    %2605 = vmatprep.subr.mxu0 0.0
    %v2606 = vand.u32 %v89, 4294901760
    %v2607 = vsub.f32 %v89, %v2606
    %v2608 = vand.u32 %v2607, 4294901760
    %2609 = vmatpush1.msra.mxu0 %v2608
    %2610 = vmatprep.subr.mxu0 0.0
    %v2611 = vand.u32 %v88, 4294901760
    %v2612 = vsub.f32 %v88, %v2611
    %v2613 = vand.u32 %v2612, 4294901760
    %2614 = vmatpush1.msra.mxu0 %v2613
    %2615 = vmatprep.subr.mxu0 0.0
    %v2616 = vand.u32 %v87, 4294901760
    %v2617 = vsub.f32 %v87, %v2616
    %v2618 = vand.u32 %v2617, 4294901760
    %2619 = vmatpush1.msra.mxu0 %v2618
    %2620 = vmatprep.subr.mxu0 0.0
    %v2621 = vand.u32 %v86, 4294901760
    %v2622 = vsub.f32 %v86, %v2621
    %v2623 = vand.u32 %v2622, 4294901760
    %2624 = vmatpush1.msra.mxu0 %v2623
    %2625 = vmatprep.subr.mxu0 0.0
    %2626 = vmatpush2.msra.mxu0 0.0
    %2627 = vmatprep.subr.mxu0 0.0
    %2628 = vmatpush2.msra.mxu0 0.0
    %2629 = vmatprep.subr.mxu0 0.0
    %2630 = vmatpush2.msra.mxu0 0.0
    %2631 = vmatprep.subr.mxu0 0.0
    %2632 = vmatpush2.msra.mxu0 0.0
    %2633 = vmatprep.subr.mxu0 0.0
    %2634 = vmatpush2.msra.mxu0 0.0
    %2635 = vmatprep.subr.mxu0 0.0
    %2636 = vmatpush2.msra.mxu0 0.0
    %2637 = vmatprep.subr.mxu0 0.0
    %2638 = vmatpush2.msra.mxu0 0.0
    %2639 = vmatprep.subr.mxu0 0.0
    %2640 = vmatpush2.msra.mxu0 0.0
    %2641 = vmatprep.subr.mxu0 0.0
    %2642 = vmatpush2.msra.mxu0 0.0
    %2643 = vmatprep.subr.mxu0 0.0
    %2644 = vmatpush2.msra.mxu0 0.0
    %2645 = vmatprep.subr.mxu0 0.0
    %2646 = vmatpush2.msra.mxu0 0.0
    %2647 = vmatprep.subr.mxu0 0.0
    %2648 = vmatpush2.msra.mxu0 0.0
    %2649 = vmatprep.subr.mxu0 0.0
    %2650 = vmatpush2.msra.mxu0 0.0
    %2651 = vmatprep.subr.mxu0 0.0
    %2652 = vmatpush2.msra.mxu0 0.0
    %2653 = vmatprep.subr.mxu0 0.0
    %2654 = vmatpush2.msra.mxu0 0.0
    %2655 = vmatprep.subr.mxu0 0.0
    %2656 = vmatpush2.msra.mxu0 0.0
    %2657 = vmatprep.mubr.f32.mxu0 0.0
    %v2658 = vand.u32 %v2109, 4294901760
    %2659 = vmatmul.mubr.f32.gmra.mxu0 %v2658
    %v2660 = vpop.f32.mrf.mxu0
    %v2661 = vadd.f32 %v2542, %v2660
    %v2662 = vpop.f32.mrf.mxu0
    %2663 = vdwg.mxu0
    %2664 = vmatprep.subr.mxu0 0.0
    %v2665 = vand.u32 %v101, 4294901760
    %2666 = vmatpush1.msra.mxu0 %v2665
    %2667 = vmatprep.subr.mxu0 0.0
    %v2668 = vand.u32 %v100, 4294901760
    %2669 = vmatpush1.msra.mxu0 %v2668
    %2670 = vmatprep.subr.mxu0 0.0
    %v2671 = vand.u32 %v99, 4294901760
    %2672 = vmatpush1.msra.mxu0 %v2671
    %2673 = vmatprep.subr.mxu0 0.0
    %v2674 = vand.u32 %v98, 4294901760
    %2675 = vmatpush1.msra.mxu0 %v2674
    %2676 = vmatprep.subr.mxu0 0.0
    %v2677 = vand.u32 %v97, 4294901760
    %2678 = vmatpush1.msra.mxu0 %v2677
    %2679 = vmatprep.subr.mxu0 0.0
    %v2680 = vand.u32 %v96, 4294901760
    %2681 = vmatpush1.msra.mxu0 %v2680
    %2682 = vmatprep.subr.mxu0 0.0
    %v2683 = vand.u32 %v95, 4294901760
    %2684 = vmatpush1.msra.mxu0 %v2683
    %2685 = vmatprep.subr.mxu0 0.0
    %v2686 = vand.u32 %v94, 4294901760
    %2687 = vmatpush1.msra.mxu0 %v2686
    %2688 = vmatprep.subr.mxu0 0.0
    %v2689 = vand.u32 %v93, 4294901760
    %2690 = vmatpush1.msra.mxu0 %v2689
    %2691 = vmatprep.subr.mxu0 0.0
    %v2692 = vand.u32 %v92, 4294901760
    %2693 = vmatpush1.msra.mxu0 %v2692
    %2694 = vmatprep.subr.mxu0 0.0
    %v2695 = vand.u32 %v91, 4294901760
    %2696 = vmatpush1.msra.mxu0 %v2695
    %2697 = vmatprep.subr.mxu0 0.0
    %v2698 = vand.u32 %v90, 4294901760
    %2699 = vmatpush1.msra.mxu0 %v2698
    %2700 = vmatprep.subr.mxu0 0.0
    %v2701 = vand.u32 %v89, 4294901760
    %2702 = vmatpush1.msra.mxu0 %v2701
    %2703 = vmatprep.subr.mxu0 0.0
    %v2704 = vand.u32 %v88, 4294901760
    %2705 = vmatpush1.msra.mxu0 %v2704
    %2706 = vmatprep.subr.mxu0 0.0
    %v2707 = vand.u32 %v87, 4294901760
    %2708 = vmatpush1.msra.mxu0 %v2707
    %2709 = vmatprep.subr.mxu0 0.0
    %v2710 = vand.u32 %v86, 4294901760
    %2711 = vmatpush1.msra.mxu0 %v2710
    %2712 = vmatprep.subr.mxu0 0.0
    %2713 = vmatpush2.msra.mxu0 0.0
    %2714 = vmatprep.subr.mxu0 0.0
    %2715 = vmatpush2.msra.mxu0 0.0
    %2716 = vmatprep.subr.mxu0 0.0
    %2717 = vmatpush2.msra.mxu0 0.0
    %2718 = vmatprep.subr.mxu0 0.0
    %2719 = vmatpush2.msra.mxu0 0.0
    %2720 = vmatprep.subr.mxu0 0.0
    %2721 = vmatpush2.msra.mxu0 0.0
    %2722 = vmatprep.subr.mxu0 0.0
    %2723 = vmatpush2.msra.mxu0 0.0
    %2724 = vmatprep.subr.mxu0 0.0
    %2725 = vmatpush2.msra.mxu0 0.0
    %2726 = vmatprep.subr.mxu0 0.0
    %2727 = vmatpush2.msra.mxu0 0.0
    %2728 = vmatprep.subr.mxu0 0.0
    %2729 = vmatpush2.msra.mxu0 0.0
    %2730 = vmatprep.subr.mxu0 0.0
    %2731 = vmatpush2.msra.mxu0 0.0
    %2732 = vmatprep.subr.mxu0 0.0
    %2733 = vmatpush2.msra.mxu0 0.0
    %2734 = vmatprep.subr.mxu0 0.0
    %2735 = vmatpush2.msra.mxu0 0.0
    %2736 = vmatprep.subr.mxu0 0.0
    %2737 = vmatpush2.msra.mxu0 0.0
    %2738 = vmatprep.subr.mxu0 0.0
    %2739 = vmatpush2.msra.mxu0 0.0
    %2740 = vmatprep.subr.mxu0 0.0
    %2741 = vmatpush2.msra.mxu0 0.0
    %2742 = vmatprep.subr.mxu0 0.0
    %2743 = vmatpush2.msra.mxu0 0.0
    %2744 = vmatprep.mubr.f32.mxu0 0.0
    %v2745 = vand.u32 %v2109, 4294901760
    %2746 = vmatmul.mubr.f32.gmra.mxu0 %v2745
    %v2747 = vpop.f32.mrf.mxu0
    %v2748 = vadd.f32 %v2661, %v2747
    %v2749 = vpop.f32.mrf.mxu0
    %2750 = vdwg.mxu0
    %v2751 = vsub.f32 0.0, %v2748
    %v2752 = vmul.f32 %v2751, 1.442695
    %v2753 = vpow.pop %v2752
    %v2754 = vmul.f32 %v2105, %v2753
    %v2755 = vmul.f32 %v752, %v2754
    %2756 = vst [vmem:[#allocation10] sm:$0xff] %v2755
    // Predicated region
    $region34: #{tpu_custom_call.1} parent=1 // pred_check
      _
    $region35: #{tpu_custom_call.1} parent=1 // pred_check_branch
      %2758 = sbr.rel (0) target = $region37
    $region36: #{tpu_custom_call.1} parent=1 // pred_region
      %s2760 = ssub.s32 128, 128
      %2761 = vsyncadd [#allocation4], %s2760
      %s2763 = sshll.u32 [#allocation10], 4
      %s2764 = int_to_ptr.vmem [resolvable:$true] %s2763
      %2766 = dma.vmem_to_hbm [thread:$0]  %s2764, 128, %s4, [#allocation4]
    $region37: #{tpu_custom_call.1} parent=1 // pred_fallthru
      _
    // Predicated region
    $region38: #{tpu_custom_call.1} parent=1 // pred_check
      _
    $region39: #{tpu_custom_call.1} parent=1 // pred_check_branch
      %2768 = sbr.rel (0) target = $region41
    $region40: #{tpu_custom_call.1} parent=1 // pred_region
      %2769 = dma.done [#allocation4], 128
    $region41: #{tpu_custom_call.1} parent=1 // pred_fallthru
      _
    %2770 = vsyncpa [#allocation3], 1
    %2771 = vsyncpa [#allocation6], 1
    %2772 = vsyncpa [#allocation9], 1
    %2773 = vsyncpa [#allocation4], 1

</llo_original>
